<compile_context>
chip_gen: v7x
topology: tpu7x:2x2x1
jax: 0.10.0
libtpu: 0.0.40
codegen_flags: <defaults>
</compile_context>

<pallas_src>
import jax
import jax.numpy as jnp
from jax.experimental import pallas as pl
from jax.experimental.pallas import tpu as pltpu

NPAD = 128  # lane-dense width for the padded classifier output


def _round_up(n, m):
    return ((n + m - 1) // m) * m


def mlp_kernel(x_ref, w1_ref, b1_ref, w2_ref, b2_ref, w3_ref, b3_ref, o_ref):
    # x tile: (TB, 4) f32.  Weights are bf16; biases f32.
    x = x_ref[...]

    # ---- fc1 + ReLU -> (TB, 2048) ------------------------------------------
    # K=4 would waste the MXU contraction dim (4/128 utilized); do it as 4
    # VPU broadcast multiply-accumulates in f32 instead.
    w1 = w1_ref[...].astype(jnp.float32)          # (4, 2048), tiny
    h1 = x[:, 0:1] * w1[0:1, :] + b1_ref[...]     # broadcast (TB,1)*(1,2048)
    for k in range(1, 4):                         # static unroll, K=4
        h1 = h1 + x[:, k : k + 1] * w1[k : k + 1, :]
    h1 = jnp.maximum(h1, 0.0)

    # ---- fc2 + ReLU -> (TB, 256) -------------------------------------------
    # bf16 x bf16 -> f32 accumulation on the MXU (native fast path).
    h2 = (
        jnp.dot(h1.astype(jnp.bfloat16), w2_ref[...],
                preferred_element_type=jnp.float32)
        + b2_ref[...]
    )
    h2 = jnp.maximum(h2, 0.0)

    # ---- fc3 (padded to 128 lanes) -> (TB, 128) ----------------------------
    # Columns >= 2 of w3 are zero and their bias is -1e30, so the 128-lane
    # log-softmax below is numerically identical to a 2-class log-softmax on
    # the real columns.
    logits = (
        jnp.dot(h2.astype(jnp.bfloat16), w3_ref[...],
                preferred_element_type=jnp.float32)
        + b3_ref[...]
    )

    # ---- LogSoftmax over the (lane-dense) class axis ------------------------
    m = jnp.max(logits, axis=-1, keepdims=True)
    shifted = logits - m
    lse = jnp.log(jnp.sum(jnp.exp(shifted), axis=-1, keepdims=True))
    o_ref[...] = shifted - lse


def net_forward(x, params, *, block_b=512):
    """Run the fused MLP forward. x: (B, 4) f32 -> (B, 2) f32 log-probs."""
    w1, b1, w2, b2, w3, b3 = params
    B, F = x.shape
    n_out = w3.shape[1]

    # Pad classifier weights/bias to a lane-dense 128-wide output slab.
    w3p = jnp.zeros((w3.shape[0], NPAD), w3.dtype).at[:, :n_out].set(w3)
    b3p = jnp.full((1, NPAD), -1e30, jnp.float32).at[:, :n_out].set(b3)

    # Batch tiling: TB rows per grid step (multiple of 8 for sublane layout).
    TB = min(block_b, _round_up(B, 8))
    B_pad = _round_up(B, TB)
    if B_pad != B:
        x = jnp.pad(x, ((0, B_pad - B), (0, 0)))
    grid = (B_pad // TB,)

    out = pl.pallas_call(
        mlp_kernel,
        out_shape=jax.ShapeDtypeStruct((B_pad, NPAD), jnp.float32),
        grid_spec=pltpu.PrefetchScalarGridSpec(
            num_scalar_prefetch=0,
            grid=grid,
            in_specs=[
                # Batch-tiled activations.
                pl.BlockSpec((TB, F), lambda i: (i, 0)),
                # Weights / biases: constant block index -> DMA'd once,
                # VMEM-resident across all grid steps.
                pl.BlockSpec(w1.shape, lambda i: (0, 0)),
                pl.BlockSpec(b1.shape, lambda i: (0, 0)),
                pl.BlockSpec(w2.shape, lambda i: (0, 0)),
                pl.BlockSpec(b2.shape, lambda i: (0, 0)),
                pl.BlockSpec(w3p.shape, lambda i: (0, 0)),
                pl.BlockSpec(b3p.shape, lambda i: (0, 0)),
            ],
            out_specs=pl.BlockSpec((TB, NPAD), lambda i: (i, 0)),
        ),
        compiler_params=pltpu.CompilerParams(
            dimension_semantics=("parallel",),  # batch tiles across TCs (v7x)
        ),
    )(x, w1, b1, w2, b2, w3p, b3p)

    return out[:B, :n_out]


def init_params(key):
    # Deterministic synthetic init (PyTorch-default-like uniform fan_in scaling).
    # Weights stored pre-transposed (in_features, out_features) and in bf16;
    # biases kept in f32 (elementwise work stays f32).
    def linear_init(k, fan_in, fan_out):
        k_w, k_b = jax.random.split(k)
        bound = 1.0 / jnp.sqrt(fan_in)
        w = jax.random.uniform(k_w, (fan_in, fan_out), jnp.float32, -bound, bound)
        b = jax.random.uniform(k_b, (1, fan_out), jnp.float32, -bound, bound)
        return w.astype(jnp.bfloat16), b

    k1, k2, k3 = jax.random.split(key, 3)
    w1, b1 = linear_init(k1, 4, 2048)
    w2, b2 = linear_init(k2, 2048, 256)
    w3, b3 = linear_init(k3, 256, 2)
    return (w1, b1, w2, b2, w3, b3)


def reference_forward(x, params):
    # Pure-JAX reference with the same bf16-weight / f32-accumulate numerics.
    w1, b1, w2, b2, w3, b3 = params
    h1 = jnp.maximum(x @ w1.astype(jnp.float32) + b1, 0.0)
    h2 = jnp.maximum(
        jnp.dot(h1.astype(jnp.bfloat16), w2, preferred_element_type=jnp.float32) + b2,
        0.0,
    )
    logits = (
        jnp.dot(h2.astype(jnp.bfloat16), w3, preferred_element_type=jnp.float32) + b3
    )
    return jax.nn.log_softmax(logits, axis=1)


if __name__ == "__main__":
    key = jax.random.PRNGKey(0)
    k_params, k_x1, k_x2 = jax.random.split(key, 3)
    params = init_params(k_params)

    # Small check (single grid step).
    batch = 8
    x = jax.random.normal(k_x1, (batch, 4), dtype=jnp.float32)
    out = jax.block_until_ready(net_forward(x, params))
    ref = reference_forward(x, params)
    assert out.shape == (batch, 2)
    assert jnp.allclose(out, ref, atol=1e-2, rtol=1e-2), "mismatch vs reference (B=8)"

    # Multi-tile check: exercises batch padding, grid > 1 and resident weights.
    batch2 = 600
    x2 = jax.random.normal(k_x2, (batch2, 4), dtype=jnp.float32)
    out2 = jax.block_until_ready(net_forward(x2, params, block_b=256))
    ref2 = reference_forward(x2, params)
    assert out2.shape == (batch2, 2)
    assert jnp.allclose(out2, ref2, atol=1e-2, rtol=1e-2), "mismatch vs reference (B=600)"

    print("KERNEL_OK")
</pallas_src>

<mosaic_0001>
module attributes {stable_mosaic.version = 11 : i64} {
  func.func @mlp_kernel(%arg0: i32, %arg1: memref<8x4xf32, #tpu.memory_space<vmem>>, %arg2: memref<4x2048xbf16, #tpu.memory_space<vmem>>, %arg3: memref<1x2048xf32, #tpu.memory_space<vmem>>, %arg4: memref<2048x256xbf16, #tpu.memory_space<vmem>>, %arg5: memref<1x256xf32, #tpu.memory_space<vmem>>, %arg6: memref<256x128xbf16, #tpu.memory_space<vmem>>, %arg7: memref<1x128xf32, #tpu.memory_space<vmem>>, %arg8: memref<8x128xf32, #tpu.memory_space<vmem>>) attributes {dimension_semantics = [#tpu.dimension_semantics<parallel>], iteration_bounds = array<i64: 1>, scalar_prefetch = 0 : i64, scratch_operands = 0 : i64, tpu.core_type = #tpu.core_type<tc>, window_params = [{transform_indices = @transform_0, window_bounds = array<i64: 8, 4>}, {pipeline_mode = #tpu.pipeline_mode<synchronous>, transform_indices = @transform_1, window_bounds = array<i64: 4, 2048>}, {pipeline_mode = #tpu.pipeline_mode<synchronous>, transform_indices = @transform_2, window_bounds = array<i64: 1, 2048>}, {pipeline_mode = #tpu.pipeline_mode<synchronous>, transform_indices = @transform_3, window_bounds = array<i64: 2048, 256>}, {pipeline_mode = #tpu.pipeline_mode<synchronous>, transform_indices = @transform_4, window_bounds = array<i64: 1, 256>}, {pipeline_mode = #tpu.pipeline_mode<synchronous>, transform_indices = @transform_5, window_bounds = array<i64: 256, 128>}, {pipeline_mode = #tpu.pipeline_mode<synchronous>, transform_indices = @transform_6, window_bounds = array<i64: 1, 128>}, {transform_indices = @transform_7, window_bounds = array<i64: 8, 128>}]} {
    %c0 = arith.constant 0 : index
    %c0_0 = arith.constant 0 : index
    %0 = vector.load %arg1[%c0, %c0_0] : memref<8x4xf32, #tpu.memory_space<vmem>>, vector<8x4xf32>
    %c0_1 = arith.constant 0 : index
    %c0_2 = arith.constant 0 : index
    %1 = vector.load %arg2[%c0_1, %c0_2] : memref<4x2048xbf16, #tpu.memory_space<vmem>>, vector<4x2048xbf16>
    %2 = arith.extf %1 : vector<4x2048xbf16> to vector<4x2048xf32>
    %3 = vector.extract_strided_slice %0 {offsets = [0, 0], sizes = [8, 1], strides = [1, 1]} : vector<8x4xf32> to vector<8x1xf32>
    %4 = vector.extract_strided_slice %2 {offsets = [0, 0], sizes = [1, 2048], strides = [1, 1]} : vector<4x2048xf32> to vector<1x2048xf32>
    %5 = vector.broadcast %3 : vector<8x1xf32> to vector<8x2048xf32>
    %6 = vector.broadcast %4 : vector<1x2048xf32> to vector<8x2048xf32>
    %7 = arith.mulf %5, %6 : vector<8x2048xf32>
    %c0_3 = arith.constant 0 : index
    %c0_4 = arith.constant 0 : index
    %8 = vector.load %arg3[%c0_3, %c0_4] : memref<1x2048xf32, #tpu.memory_space<vmem>>, vector<1x2048xf32>
    %9 = vector.broadcast %8 : vector<1x2048xf32> to vector<8x2048xf32>
    %10 = arith.addf %7, %9 : vector<8x2048xf32>
    %11 = vector.extract_strided_slice %0 {offsets = [0, 1], sizes = [8, 1], strides = [1, 1]} : vector<8x4xf32> to vector<8x1xf32>
    %12 = vector.extract_strided_slice %2 {offsets = [1, 0], sizes = [1, 2048], strides = [1, 1]} : vector<4x2048xf32> to vector<1x2048xf32>
    %13 = vector.broadcast %11 : vector<8x1xf32> to vector<8x2048xf32>
    %14 = vector.broadcast %12 : vector<1x2048xf32> to vector<8x2048xf32>
    %15 = arith.mulf %13, %14 : vector<8x2048xf32>
    %16 = arith.addf %10, %15 : vector<8x2048xf32>
    %17 = vector.extract_strided_slice %0 {offsets = [0, 2], sizes = [8, 1], strides = [1, 1]} : vector<8x4xf32> to vector<8x1xf32>
    %18 = vector.extract_strided_slice %2 {offsets = [2, 0], sizes = [1, 2048], strides = [1, 1]} : vector<4x2048xf32> to vector<1x2048xf32>
    %19 = vector.broadcast %17 : vector<8x1xf32> to vector<8x2048xf32>
    %20 = vector.broadcast %18 : vector<1x2048xf32> to vector<8x2048xf32>
    %21 = arith.mulf %19, %20 : vector<8x2048xf32>
    %22 = arith.addf %16, %21 : vector<8x2048xf32>
    %23 = vector.extract_strided_slice %0 {offsets = [0, 3], sizes = [8, 1], strides = [1, 1]} : vector<8x4xf32> to vector<8x1xf32>
    %24 = vector.extract_strided_slice %2 {offsets = [3, 0], sizes = [1, 2048], strides = [1, 1]} : vector<4x2048xf32> to vector<1x2048xf32>
    %25 = vector.broadcast %23 : vector<8x1xf32> to vector<8x2048xf32>
    %26 = vector.broadcast %24 : vector<1x2048xf32> to vector<8x2048xf32>
    %27 = arith.mulf %25, %26 : vector<8x2048xf32>
    %28 = arith.addf %22, %27 : vector<8x2048xf32>
    %cst = arith.constant 0.000000e+00 : f32
    %29 = vector.broadcast %cst : f32 to vector<8x2048xf32>
    %30 = arith.maximumf %28, %29 : vector<8x2048xf32>
    %31 = arith.truncf %30 : vector<8x2048xf32> to vector<8x2048xbf16>
    %c0_5 = arith.constant 0 : index
    %c0_6 = arith.constant 0 : index
    %32 = vector.load %arg4[%c0_5, %c0_6] : memref<2048x256xbf16, #tpu.memory_space<vmem>>, vector<2048x256xbf16>
    %cst_7 = arith.constant dense<0.000000e+00> : vector<8x256xf32>
    %33 = tpu.matmul %31, %32, %cst_7 {dimension_numbers = #tpu.dot_dimension_numbers<[1], [0], [0], [1], [0, 0, 1, 1], [], []>} : vector<8x2048xbf16>, vector<2048x256xbf16>, vector<8x256xf32> -> vector<8x256xf32>
    %c0_8 = arith.constant 0 : index
    %c0_9 = arith.constant 0 : index
    %34 = vector.load %arg5[%c0_8, %c0_9] : memref<1x256xf32, #tpu.memory_space<vmem>>, vector<1x256xf32>
    %35 = vector.broadcast %34 : vector<1x256xf32> to vector<8x256xf32>
    %36 = arith.addf %33, %35 : vector<8x256xf32>
    %cst_10 = arith.constant 0.000000e+00 : f32
    %37 = vector.broadcast %cst_10 : f32 to vector<8x256xf32>
    %38 = arith.maximumf %36, %37 : vector<8x256xf32>
    %39 = arith.truncf %38 : vector<8x256xf32> to vector<8x256xbf16>
    %c0_11 = arith.constant 0 : index
    %c0_12 = arith.constant 0 : index
    %40 = vector.load %arg6[%c0_11, %c0_12] : memref<256x128xbf16, #tpu.memory_space<vmem>>, vector<256x128xbf16>
    %cst_13 = arith.constant dense<0.000000e+00> : vector<8x128xf32>
    %41 = tpu.matmul %39, %40, %cst_13 {dimension_numbers = #tpu.dot_dimension_numbers<[1], [0], [0], [1], [0, 0, 1, 1], [], []>} : vector<8x256xbf16>, vector<256x128xbf16>, vector<8x128xf32> -> vector<8x128xf32>
    %c0_14 = arith.constant 0 : index
    %c0_15 = arith.constant 0 : index
    %42 = vector.load %arg7[%c0_14, %c0_15] : memref<1x128xf32, #tpu.memory_space<vmem>>, vector<1x128xf32>
    %43 = vector.broadcast %42 : vector<1x128xf32> to vector<8x128xf32>
    %44 = arith.addf %41, %43 : vector<8x128xf32>
    %cst_16 = arith.constant dense<0xFF800000> : vector<8xf32>
    %45 = vector.multi_reduction <maximumf>, %44, %cst_16 [1] : vector<8x128xf32> to vector<8xf32>
    %46 = vector.shape_cast %45 : vector<8xf32> to vector<8x1xf32>
    %47 = vector.broadcast %46 : vector<8x1xf32> to vector<8x128xf32>
    %48 = arith.subf %44, %47 : vector<8x128xf32>
    %49 = math.exp %48 : vector<8x128xf32>
    %cst_17 = arith.constant dense<0.000000e+00> : vector<8xf32>
    %50 = vector.multi_reduction <add>, %49, %cst_17 [1] : vector<8x128xf32> to vector<8xf32>
    %51 = vector.shape_cast %50 : vector<8xf32> to vector<8x1xf32>
    %52 = math.log %51 : vector<8x1xf32>
    %53 = vector.broadcast %52 : vector<8x1xf32> to vector<8x128xf32>
    %54 = arith.subf %48, %53 : vector<8x128xf32>
    %c0_18 = arith.constant 0 : index
    %c0_19 = arith.constant 0 : index
    %55 = vector.load %arg8[%c0_18, %c0_19] : memref<8x128xf32, #tpu.memory_space<vmem>>, vector<8x128xf32>
    tpu.vector_store %arg8[%c0_18, %c0_19], %54 {strides = array<i32>} : memref<8x128xf32, #tpu.memory_space<vmem>>, vector<8x128xf32>,
    return
  }
  func.func @transform_0(%arg0: i32) -> (i32, i32) {
    %c0_i32 = arith.constant 0 : i32
    %c0_i32_0 = arith.constant 0 : i32
    return %arg0, %c0_i32 : i32, i32
  }
  func.func @transform_1(%arg0: i32) -> (i32, i32) {
    %c0_i32 = arith.constant 0 : i32
    %c0_i32_0 = arith.constant 0 : i32
    %c0_i32_1 = arith.constant 0 : i32
    return %c0_i32, %c0_i32_0 : i32, i32
  }
  func.func @transform_2(%arg0: i32) -> (i32, i32) {
    %c0_i32 = arith.constant 0 : i32
    %c0_i32_0 = arith.constant 0 : i32
    %c0_i32_1 = arith.constant 0 : i32
    return %c0_i32, %c0_i32_0 : i32, i32
  }
  func.func @transform_3(%arg0: i32) -> (i32, i32) {
    %c0_i32 = arith.constant 0 : i32
    %c0_i32_0 = arith.constant 0 : i32
    %c0_i32_1 = arith.constant 0 : i32
    return %c0_i32, %c0_i32_0 : i32, i32
  }
  func.func @transform_4(%arg0: i32) -> (i32, i32) {
    %c0_i32 = arith.constant 0 : i32
    %c0_i32_0 = arith.constant 0 : i32
    %c0_i32_1 = arith.constant 0 : i32
    return %c0_i32, %c0_i32_0 : i32, i32
  }
  func.func @transform_5(%arg0: i32) -> (i32, i32) {
    %c0_i32 = arith.constant 0 : i32
    %c0_i32_0 = arith.constant 0 : i32
    %c0_i32_1 = arith.constant 0 : i32
    return %c0_i32, %c0_i32_0 : i32, i32
  }
  func.func @transform_6(%arg0: i32) -> (i32, i32) {
    %c0_i32 = arith.constant 0 : i32
    %c0_i32_0 = arith.constant 0 : i32
    %c0_i32_1 = arith.constant 0 : i32
    return %c0_i32, %c0_i32_0 : i32, i32
  }
  func.func @transform_7(%arg0: i32) -> (i32, i32) {
    %c0_i32 = arith.constant 0 : i32
    %c0_i32_0 = arith.constant 0 : i32
    return %arg0, %c0_i32 : i32, i32
  }
}

</mosaic_0001>

<llo_original>
// kernel: tpu_custom_call.1
$region0: #{tpu_custom_call.1}
  #allocation0 [shape = 'u32[]', space=smem, size = 0x4, offset = 0x4, fixed_abs, tag = 'smem constant byte address 0x4 - core index']
  #allocation1 [shape = 'u32[144,128]{1,0:T(1,128)}', space=vmem, size = 0x12000, scoped, tag = 'internal scratch']
  %s0 = inlined_call_operand.vmem [shape: f32[8,4], index: 0, kind: input, shape index: {}]
  %s1 = inlined_call_operand.hbm [shape: bf16[4,2048], index: 1, kind: input, shape index: {}]
  %s2 = inlined_call_operand.vmem [shape: f32[1,2048], index: 2, kind: input, shape index: {}]
  %s3 = inlined_call_operand.hbm [shape: bf16[2048,256], index: 3, kind: input, shape index: {}]
  %s4 = inlined_call_operand.vmem [shape: f32[1,256], index: 4, kind: input, shape index: {}]
  %s5 = inlined_call_operand.hbm [shape: bf16[256,128], index: 5, kind: input, shape index: {}]
  %s6 = inlined_call_operand.vmem [shape: f32[1,128], index: 6, kind: input, shape index: {}]
  %s7 = inlined_call_operand.hbm [shape: f32[8,128], index: 7, kind: output, shape index: {}]
  %s8 = sld [smem:[#allocation0]]
  $region50: #{tpu_custom_call.1} parent=0
    _
  %s10 = ssub.s32 1, %s8
  %s11 = scalar_select 0, %s10, %s8
  $region1: #{tpu_custom_call.1} parent=0
    #allocation2 [shape = 'u8[16384]{0}', space=vmem, size = 0x4000, scoped, tag = 'input window, operand 1, single buffered']
    #allocation3 [shape = 's32[1]{0}', space=sflag, size = 0x4, scoped, tag = 'scoped memory for tpu_custom_call.1']
    #allocation4 [shape = 's32[1]{0}', space=sflag, size = 0x4, scoped, tag = 'scoped memory for tpu_custom_call.1']
    #allocation5 [shape = 'u8[1048576]{0}', space=vmem, size = 0x100000, scoped, tag = 'input window, operand 3, single buffered']
    #allocation6 [shape = 's32[1]{0}', space=sflag, size = 0x4, scoped, tag = 'scoped memory for tpu_custom_call.1']
    #allocation7 [shape = 'u8[65536]{0}', space=vmem, size = 0x10000, scoped, tag = 'input window, operand 5, single buffered']
    #allocation8 [shape = 'u8[4096]{0}', space=vmem, size = 0x1000, scoped, tag = 'output window, operand 0, single buffered']
    %12 = vsyncpa [#allocation3], 0
    %13 = vsyncpa [#allocation6], 0
    %14 = vsyncpa [#allocation4], 0
    // Predicated region
    $region2: #{tpu_custom_call.1} parent=1 // pred_check
      _
    $region3: #{tpu_custom_call.1} parent=1 // pred_check_branch
      %16 = sbr.rel (0) target = $region5
    $region4: #{tpu_custom_call.1} parent=1 // pred_region
      _
    $region5: #{tpu_custom_call.1} parent=1 // pred_fallthru
      _
    // Predicated region
    $region6: #{tpu_custom_call.1} parent=1 // pred_check
      _
    $region7: #{tpu_custom_call.1} parent=1 // pred_check_branch
      %18 = sbr.rel (0) target = $region9
    $region8: #{tpu_custom_call.1} parent=1 // pred_region
      %s20 = ssub.s32 512, 512
      %21 = vsyncadd [#allocation3], %s20
      %s23 = sshll.u32 [#allocation2], 4
      %s24 = int_to_ptr.vmem [resolvable:$true] %s23
      %26 = dma.hbm_to_vmem [thread:$0]  %s1, 512, %s24, [#allocation3]
    $region9: #{tpu_custom_call.1} parent=1 // pred_fallthru
      _
    // Predicated region
    $region10: #{tpu_custom_call.1} parent=1 // pred_check
      _
    $region11: #{tpu_custom_call.1} parent=1 // pred_check_branch
      %28 = sbr.rel (0) target = $region13
    $region12: #{tpu_custom_call.1} parent=1 // pred_region
      _
    $region13: #{tpu_custom_call.1} parent=1 // pred_fallthru
      _
    // Predicated region
    $region14: #{tpu_custom_call.1} parent=1 // pred_check
      _
    $region15: #{tpu_custom_call.1} parent=1 // pred_check_branch
      %30 = sbr.rel (0) target = $region17
    $region16: #{tpu_custom_call.1} parent=1 // pred_region
      %s32 = ssub.s32 32768, 32768
      %33 = vsyncadd [#allocation6], %s32
      %s34 = sshll.u32 [#allocation5], 4
      %s35 = int_to_ptr.vmem [resolvable:$true] %s34
      %40 = dma.hbm_to_vmem [thread:$0]  %s3, 32768, %s35, [#allocation6], 128, 128, 8
    $region17: #{tpu_custom_call.1} parent=1 // pred_fallthru
      _
    // Predicated region
    $region18: #{tpu_custom_call.1} parent=1 // pred_check
      _
    $region19: #{tpu_custom_call.1} parent=1 // pred_check_branch
      %42 = sbr.rel (0) target = $region21
    $region20: #{tpu_custom_call.1} parent=1 // pred_region
      _
    $region21: #{tpu_custom_call.1} parent=1 // pred_fallthru
      _
    // Predicated region
    $region22: #{tpu_custom_call.1} parent=1 // pred_check
      _
    $region23: #{tpu_custom_call.1} parent=1 // pred_check_branch
      %44 = sbr.rel (0) target = $region25
    $region24: #{tpu_custom_call.1} parent=1 // pred_region
      %s46 = ssub.s32 2048, 2048
      %47 = vsyncadd [#allocation6], %s46
      %s48 = sshll.u32 [#allocation7], 4
      %s49 = int_to_ptr.vmem [resolvable:$true] %s48
      %54 = dma.hbm_to_vmem [thread:$0]  %s5, 2048, %s49, [#allocation6], 64, 64, 4
    $region25: #{tpu_custom_call.1} parent=1 // pred_fallthru
      _
    // Predicated region
    $region26: #{tpu_custom_call.1} parent=1 // pred_check
      _
    $region27: #{tpu_custom_call.1} parent=1 // pred_check_branch
      %56 = sbr.rel (0) target = $region29
    $region28: #{tpu_custom_call.1} parent=1 // pred_region
      _
    $region29: #{tpu_custom_call.1} parent=1 // pred_fallthru
      _
    // Predicated region
    $region30: #{tpu_custom_call.1} parent=1 // pred_check
      _
    $region31: #{tpu_custom_call.1} parent=1 // pred_check_branch
      %58 = sbr.rel (0) target = $region33
    $region32: #{tpu_custom_call.1} parent=1 // pred_region
      %59 = dma.done [#allocation3], 512
    $region33: #{tpu_custom_call.1} parent=1 // pred_fallthru
      _
    // Predicated region
    $region34: #{tpu_custom_call.1} parent=1 // pred_check
      _
    $region35: #{tpu_custom_call.1} parent=1 // pred_check_branch
      %61 = sbr.rel (0) target = $region37
    $region36: #{tpu_custom_call.1} parent=1 // pred_region
      %62 = dma.done [#allocation6], 32768
    $region37: #{tpu_custom_call.1} parent=1 // pred_fallthru
      _
    // Predicated region
    $region38: #{tpu_custom_call.1} parent=1 // pred_check
      _
    $region39: #{tpu_custom_call.1} parent=1 // pred_check_branch
      %64 = sbr.rel (0) target = $region41
    $region40: #{tpu_custom_call.1} parent=1 // pred_region
      %65 = dma.done [#allocation6], 2048
    $region41: #{tpu_custom_call.1} parent=1 // pred_fallthru
      _
    %v67 = vld [vmem:[%s0] sm:$0xff]
    %v68 = vld [vmem:[#allocation2] sm:$0xff]
    %v69 = vld [vmem:[#allocation2 + $0x8] sm:$0xff]
    %v70 = vld [vmem:[#allocation2 + $0x10] sm:$0xff]
    %v71 = vld [vmem:[#allocation2 + $0x18] sm:$0xff]
    %v72 = vunpack.c.l.bf16 %v68
    %v73 = vunpack.c.h.bf16 %v68
    %v74 = vunpack.c.l.bf16 %v69
    %v75 = vunpack.c.h.bf16 %v69
    %v76 = vunpack.c.l.bf16 %v70
    %v77 = vunpack.c.h.bf16 %v70
    %v78 = vunpack.c.l.bf16 %v71
    %v79 = vunpack.c.h.bf16 %v71
    %81 = vset.pattern.permute.xlu0 0
    %82 = vperm.xlu0 %81, %v67
    %v83 = vpop.permute.xlu0 %82
    %v93 = vlaneseq
    %v94 = vshrl.u32 %v93, 7
    %v95 = vsub.s32 0, %v94
    %v96 = vrot.slane %v72, %v95
    %v97 = vlaneseq
    %v98 = vshrl.u32 %v97, 7
    %v99 = vsub.s32 4, %v98
    %v100 = vrot.slane %v72, %v99
    %v101 = vlaneseq
    %v102 = vshrl.u32 %v101, 7
    %v103 = vsub.s32 0, %v102
    %v104 = vrot.slane %v73, %v103
    %v105 = vlaneseq
    %v106 = vshrl.u32 %v105, 7
    %v107 = vsub.s32 4, %v106
    %v108 = vrot.slane %v73, %v107
    %v109 = vlaneseq
    %v110 = vshrl.u32 %v109, 7
    %v111 = vsub.s32 0, %v110
    %v112 = vrot.slane %v74, %v111
    %v113 = vlaneseq
    %v114 = vshrl.u32 %v113, 7
    %v115 = vsub.s32 4, %v114
    %v116 = vrot.slane %v74, %v115
    %v117 = vlaneseq
    %v118 = vshrl.u32 %v117, 7
    %v119 = vsub.s32 0, %v118
    %v120 = vrot.slane %v75, %v119
    %v121 = vlaneseq
    %v122 = vshrl.u32 %v121, 7
    %v123 = vsub.s32 4, %v122
    %v124 = vrot.slane %v75, %v123
    %v125 = vlaneseq
    %v126 = vshrl.u32 %v125, 7
    %v127 = vsub.s32 0, %v126
    %v128 = vrot.slane %v76, %v127
    %v129 = vlaneseq
    %v130 = vshrl.u32 %v129, 7
    %v131 = vsub.s32 4, %v130
    %v132 = vrot.slane %v76, %v131
    %v133 = vlaneseq
    %v134 = vshrl.u32 %v133, 7
    %v135 = vsub.s32 0, %v134
    %v136 = vrot.slane %v77, %v135
    %v137 = vlaneseq
    %v138 = vshrl.u32 %v137, 7
    %v139 = vsub.s32 4, %v138
    %v140 = vrot.slane %v77, %v139
    %v141 = vlaneseq
    %v142 = vshrl.u32 %v141, 7
    %v143 = vsub.s32 0, %v142
    %v144 = vrot.slane %v78, %v143
    %v145 = vlaneseq
    %v146 = vshrl.u32 %v145, 7
    %v147 = vsub.s32 4, %v146
    %v148 = vrot.slane %v78, %v147
    %v149 = vlaneseq
    %v150 = vshrl.u32 %v149, 7
    %v151 = vsub.s32 0, %v150
    %v152 = vrot.slane %v79, %v151
    %v153 = vlaneseq
    %v154 = vshrl.u32 %v153, 7
    %v155 = vsub.s32 4, %v154
    %v156 = vrot.slane %v79, %v155
    %v173 = vlaneseq
    %v174 = vshrl.u32 %v173, 7
    %v175 = vsub.s32 0, %v174
    %v176 = vrot.slane %v96, %v175
    %v177 = vlaneseq
    %v178 = vshrl.u32 %v177, 7
    %v179 = vsub.s32 0, %v178
    %v180 = vrot.slane %v100, %v179
    %v181 = vlaneseq
    %v182 = vshrl.u32 %v181, 7
    %v183 = vsub.s32 0, %v182
    %v184 = vrot.slane %v104, %v183
    %v185 = vlaneseq
    %v186 = vshrl.u32 %v185, 7
    %v187 = vsub.s32 0, %v186
    %v188 = vrot.slane %v108, %v187
    %v189 = vlaneseq
    %v190 = vshrl.u32 %v189, 7
    %v191 = vsub.s32 0, %v190
    %v192 = vrot.slane %v112, %v191
    %v193 = vlaneseq
    %v194 = vshrl.u32 %v193, 7
    %v195 = vsub.s32 0, %v194
    %v196 = vrot.slane %v116, %v195
    %v197 = vlaneseq
    %v198 = vshrl.u32 %v197, 7
    %v199 = vsub.s32 0, %v198
    %v200 = vrot.slane %v120, %v199
    %v201 = vlaneseq
    %v202 = vshrl.u32 %v201, 7
    %v203 = vsub.s32 0, %v202
    %v204 = vrot.slane %v124, %v203
    %v205 = vlaneseq
    %v206 = vshrl.u32 %v205, 7
    %v207 = vsub.s32 0, %v206
    %v208 = vrot.slane %v128, %v207
    %v209 = vlaneseq
    %v210 = vshrl.u32 %v209, 7
    %v211 = vsub.s32 0, %v210
    %v212 = vrot.slane %v132, %v211
    %v213 = vlaneseq
    %v214 = vshrl.u32 %v213, 7
    %v215 = vsub.s32 0, %v214
    %v216 = vrot.slane %v136, %v215
    %v217 = vlaneseq
    %v218 = vshrl.u32 %v217, 7
    %v219 = vsub.s32 0, %v218
    %v220 = vrot.slane %v140, %v219
    %v221 = vlaneseq
    %v222 = vshrl.u32 %v221, 7
    %v223 = vsub.s32 0, %v222
    %v224 = vrot.slane %v144, %v223
    %v225 = vlaneseq
    %v226 = vshrl.u32 %v225, 7
    %v227 = vsub.s32 0, %v226
    %v228 = vrot.slane %v148, %v227
    %v229 = vlaneseq
    %v230 = vshrl.u32 %v229, 7
    %v231 = vsub.s32 0, %v230
    %v232 = vrot.slane %v152, %v231
    %v233 = vlaneseq
    %v234 = vshrl.u32 %v233, 7
    %v235 = vsub.s32 0, %v234
    %v236 = vrot.slane %v156, %v235
    %v237 = vmul.f32 %v83, %v176
    %v238 = vmul.f32 %v83, %v180
    %v239 = vmul.f32 %v83, %v184
    %v240 = vmul.f32 %v83, %v188
    %v241 = vmul.f32 %v83, %v192
    %v242 = vmul.f32 %v83, %v196
    %v243 = vmul.f32 %v83, %v200
    %v244 = vmul.f32 %v83, %v204
    %v245 = vmul.f32 %v83, %v208
    %v246 = vmul.f32 %v83, %v212
    %v247 = vmul.f32 %v83, %v216
    %v248 = vmul.f32 %v83, %v220
    %v249 = vmul.f32 %v83, %v224
    %v250 = vmul.f32 %v83, %v228
    %v251 = vmul.f32 %v83, %v232
    %v252 = vmul.f32 %v83, %v236
    %v253 = vld [vmem:[%s2] sm:$0xff]
    %v254 = vld [vmem:[%s2 + $0x8] sm:$0xff]
    %v257 = vlaneseq
    %v258 = vshrl.u32 %v257, 7
    %v259 = vsub.s32 0, %v258
    %v260 = vrot.slane %v253, %v259
    %v261 = vlaneseq
    %v262 = vshrl.u32 %v261, 7
    %v263 = vsub.s32 1, %v262
    %v264 = vrot.slane %v253, %v263
    %v265 = vlaneseq
    %v266 = vshrl.u32 %v265, 7
    %v267 = vsub.s32 2, %v266
    %v268 = vrot.slane %v253, %v267
    %v269 = vlaneseq
    %v270 = vshrl.u32 %v269, 7
    %v271 = vsub.s32 3, %v270
    %v272 = vrot.slane %v253, %v271
    %v273 = vlaneseq
    %v274 = vshrl.u32 %v273, 7
    %v275 = vsub.s32 4, %v274
    %v276 = vrot.slane %v253, %v275
    %v277 = vlaneseq
    %v278 = vshrl.u32 %v277, 7
    %v279 = vsub.s32 5, %v278
    %v280 = vrot.slane %v253, %v279
    %v281 = vlaneseq
    %v282 = vshrl.u32 %v281, 7
    %v283 = vsub.s32 6, %v282
    %v284 = vrot.slane %v253, %v283
    %v285 = vlaneseq
    %v286 = vshrl.u32 %v285, 7
    %v287 = vsub.s32 7, %v286
    %v288 = vrot.slane %v253, %v287
    %v289 = vlaneseq
    %v290 = vshrl.u32 %v289, 7
    %v291 = vsub.s32 0, %v290
    %v292 = vrot.slane %v254, %v291
    %v293 = vlaneseq
    %v294 = vshrl.u32 %v293, 7
    %v295 = vsub.s32 1, %v294
    %v296 = vrot.slane %v254, %v295
    %v297 = vlaneseq
    %v298 = vshrl.u32 %v297, 7
    %v299 = vsub.s32 2, %v298
    %v300 = vrot.slane %v254, %v299
    %v301 = vlaneseq
    %v302 = vshrl.u32 %v301, 7
    %v303 = vsub.s32 3, %v302
    %v304 = vrot.slane %v254, %v303
    %v305 = vlaneseq
    %v306 = vshrl.u32 %v305, 7
    %v307 = vsub.s32 4, %v306
    %v308 = vrot.slane %v254, %v307
    %v309 = vlaneseq
    %v310 = vshrl.u32 %v309, 7
    %v311 = vsub.s32 5, %v310
    %v312 = vrot.slane %v254, %v311
    %v313 = vlaneseq
    %v314 = vshrl.u32 %v313, 7
    %v315 = vsub.s32 6, %v314
    %v316 = vrot.slane %v254, %v315
    %v317 = vlaneseq
    %v318 = vshrl.u32 %v317, 7
    %v319 = vsub.s32 7, %v318
    %v320 = vrot.slane %v254, %v319
    %v337 = vadd.f32 %v237, %v260
    %v338 = vadd.f32 %v238, %v264
    %v339 = vadd.f32 %v239, %v268
    %v340 = vadd.f32 %v240, %v272
    %v341 = vadd.f32 %v241, %v276
    %v342 = vadd.f32 %v242, %v280
    %v343 = vadd.f32 %v243, %v284
    %v344 = vadd.f32 %v244, %v288
    %v345 = vadd.f32 %v245, %v292
    %v346 = vadd.f32 %v246, %v296
    %v347 = vadd.f32 %v247, %v300
    %v348 = vadd.f32 %v248, %v304
    %v349 = vadd.f32 %v249, %v308
    %v350 = vadd.f32 %v250, %v312
    %v351 = vadd.f32 %v251, %v316
    %v352 = vadd.f32 %v252, %v320
    %353 = vset.pattern.permute.xlu0 1
    %354 = vperm.xlu0 %353, %v67
    %v355 = vpop.permute.xlu0 %354
    %v357 = vlaneseq
    %v358 = vshrl.u32 %v357, 7
    %v359 = vsub.s32 1, %v358
    %v360 = vrot.slane %v72, %v359
    %v361 = vlaneseq
    %v362 = vshrl.u32 %v361, 7
    %v363 = vsub.s32 5, %v362
    %v364 = vrot.slane %v72, %v363
    %v365 = vlaneseq
    %v366 = vshrl.u32 %v365, 7
    %v367 = vsub.s32 1, %v366
    %v368 = vrot.slane %v73, %v367
    %v369 = vlaneseq
    %v370 = vshrl.u32 %v369, 7
    %v371 = vsub.s32 5, %v370
    %v372 = vrot.slane %v73, %v371
    %v373 = vlaneseq
    %v374 = vshrl.u32 %v373, 7
    %v375 = vsub.s32 1, %v374
    %v376 = vrot.slane %v74, %v375
    %v377 = vlaneseq
    %v378 = vshrl.u32 %v377, 7
    %v379 = vsub.s32 5, %v378
    %v380 = vrot.slane %v74, %v379
    %v381 = vlaneseq
    %v382 = vshrl.u32 %v381, 7
    %v383 = vsub.s32 1, %v382
    %v384 = vrot.slane %v75, %v383
    %v385 = vlaneseq
    %v386 = vshrl.u32 %v385, 7
    %v387 = vsub.s32 5, %v386
    %v388 = vrot.slane %v75, %v387
    %v389 = vlaneseq
    %v390 = vshrl.u32 %v389, 7
    %v391 = vsub.s32 1, %v390
    %v392 = vrot.slane %v76, %v391
    %v393 = vlaneseq
    %v394 = vshrl.u32 %v393, 7
    %v395 = vsub.s32 5, %v394
    %v396 = vrot.slane %v76, %v395
    %v397 = vlaneseq
    %v398 = vshrl.u32 %v397, 7
    %v399 = vsub.s32 1, %v398
    %v400 = vrot.slane %v77, %v399
    %v401 = vlaneseq
    %v402 = vshrl.u32 %v401, 7
    %v403 = vsub.s32 5, %v402
    %v404 = vrot.slane %v77, %v403
    %v405 = vlaneseq
    %v406 = vshrl.u32 %v405, 7
    %v407 = vsub.s32 1, %v406
    %v408 = vrot.slane %v78, %v407
    %v409 = vlaneseq
    %v410 = vshrl.u32 %v409, 7
    %v411 = vsub.s32 5, %v410
    %v412 = vrot.slane %v78, %v411
    %v413 = vlaneseq
    %v414 = vshrl.u32 %v413, 7
    %v415 = vsub.s32 1, %v414
    %v416 = vrot.slane %v79, %v415
    %v417 = vlaneseq
    %v418 = vshrl.u32 %v417, 7
    %v419 = vsub.s32 5, %v418
    %v420 = vrot.slane %v79, %v419
    %v437 = vlaneseq
    %v438 = vshrl.u32 %v437, 7
    %v439 = vsub.s32 1, %v438
    %v440 = vrot.slane %v360, %v439
    %v441 = vlaneseq
    %v442 = vshrl.u32 %v441, 7
    %v443 = vsub.s32 1, %v442
    %v444 = vrot.slane %v364, %v443
    %v445 = vlaneseq
    %v446 = vshrl.u32 %v445, 7
    %v447 = vsub.s32 1, %v446
    %v448 = vrot.slane %v368, %v447
    %v449 = vlaneseq
    %v450 = vshrl.u32 %v449, 7
    %v451 = vsub.s32 1, %v450
    %v452 = vrot.slane %v372, %v451
    %v453 = vlaneseq
    %v454 = vshrl.u32 %v453, 7
    %v455 = vsub.s32 1, %v454
    %v456 = vrot.slane %v376, %v455
    %v457 = vlaneseq
    %v458 = vshrl.u32 %v457, 7
    %v459 = vsub.s32 1, %v458
    %v460 = vrot.slane %v380, %v459
    %v461 = vlaneseq
    %v462 = vshrl.u32 %v461, 7
    %v463 = vsub.s32 1, %v462
    %v464 = vrot.slane %v384, %v463
    %v465 = vlaneseq
    %v466 = vshrl.u32 %v465, 7
    %v467 = vsub.s32 1, %v466
    %v468 = vrot.slane %v388, %v467
    %v469 = vlaneseq
    %v470 = vshrl.u32 %v469, 7
    %v471 = vsub.s32 1, %v470
    %v472 = vrot.slane %v392, %v471
    %v473 = vlaneseq
    %v474 = vshrl.u32 %v473, 7
    %v475 = vsub.s32 1, %v474
    %v476 = vrot.slane %v396, %v475
    %v477 = vlaneseq
    %v478 = vshrl.u32 %v477, 7
    %v479 = vsub.s32 1, %v478
    %v480 = vrot.slane %v400, %v479
    %v481 = vlaneseq
    %v482 = vshrl.u32 %v481, 7
    %v483 = vsub.s32 1, %v482
    %v484 = vrot.slane %v404, %v483
    %v485 = vlaneseq
    %v486 = vshrl.u32 %v485, 7
    %v487 = vsub.s32 1, %v486
    %v488 = vrot.slane %v408, %v487
    %v489 = vlaneseq
    %v490 = vshrl.u32 %v489, 7
    %v491 = vsub.s32 1, %v490
    %v492 = vrot.slane %v412, %v491
    %v493 = vlaneseq
    %v494 = vshrl.u32 %v493, 7
    %v495 = vsub.s32 1, %v494
    %v496 = vrot.slane %v416, %v495
    %v497 = vlaneseq
    %v498 = vshrl.u32 %v497, 7
    %v499 = vsub.s32 1, %v498
    %v500 = vrot.slane %v420, %v499
    %v501 = vmul.f32 %v355, %v440
    %v502 = vmul.f32 %v355, %v444
    %v503 = vmul.f32 %v355, %v448
    %v504 = vmul.f32 %v355, %v452
    %v505 = vmul.f32 %v355, %v456
    %v506 = vmul.f32 %v355, %v460
    %v507 = vmul.f32 %v355, %v464
    %v508 = vmul.f32 %v355, %v468
    %v509 = vmul.f32 %v355, %v472
    %v510 = vmul.f32 %v355, %v476
    %v511 = vmul.f32 %v355, %v480
    %v512 = vmul.f32 %v355, %v484
    %v513 = vmul.f32 %v355, %v488
    %v514 = vmul.f32 %v355, %v492
    %v515 = vmul.f32 %v355, %v496
    %v516 = vmul.f32 %v355, %v500
    %v517 = vadd.f32 %v337, %v501
    %v518 = vadd.f32 %v338, %v502
    %v519 = vadd.f32 %v339, %v503
    %v520 = vadd.f32 %v340, %v504
    %v521 = vadd.f32 %v341, %v505
    %v522 = vadd.f32 %v342, %v506
    %v523 = vadd.f32 %v343, %v507
    %v524 = vadd.f32 %v344, %v508
    %v525 = vadd.f32 %v345, %v509
    %v526 = vadd.f32 %v346, %v510
    %v527 = vadd.f32 %v347, %v511
    %v528 = vadd.f32 %v348, %v512
    %v529 = vadd.f32 %v349, %v513
    %v530 = vadd.f32 %v350, %v514
    %v531 = vadd.f32 %v351, %v515
    %v532 = vadd.f32 %v352, %v516
    %533 = vset.pattern.permute.xlu0 2
    %534 = vperm.xlu0 %533, %v67
    %v535 = vpop.permute.xlu0 %534
    %v537 = vlaneseq
    %v538 = vshrl.u32 %v537, 7
    %v539 = vsub.s32 2, %v538
    %v540 = vrot.slane %v72, %v539
    %v541 = vlaneseq
    %v542 = vshrl.u32 %v541, 7
    %v543 = vsub.s32 6, %v542
    %v544 = vrot.slane %v72, %v543
    %v545 = vlaneseq
    %v546 = vshrl.u32 %v545, 7
    %v547 = vsub.s32 2, %v546
    %v548 = vrot.slane %v73, %v547
    %v549 = vlaneseq
    %v550 = vshrl.u32 %v549, 7
    %v551 = vsub.s32 6, %v550
    %v552 = vrot.slane %v73, %v551
    %v553 = vlaneseq
    %v554 = vshrl.u32 %v553, 7
    %v555 = vsub.s32 2, %v554
    %v556 = vrot.slane %v74, %v555
    %v557 = vlaneseq
    %v558 = vshrl.u32 %v557, 7
    %v559 = vsub.s32 6, %v558
    %v560 = vrot.slane %v74, %v559
    %v561 = vlaneseq
    %v562 = vshrl.u32 %v561, 7
    %v563 = vsub.s32 2, %v562
    %v564 = vrot.slane %v75, %v563
    %v565 = vlaneseq
    %v566 = vshrl.u32 %v565, 7
    %v567 = vsub.s32 6, %v566
    %v568 = vrot.slane %v75, %v567
    %v569 = vlaneseq
    %v570 = vshrl.u32 %v569, 7
    %v571 = vsub.s32 2, %v570
    %v572 = vrot.slane %v76, %v571
    %v573 = vlaneseq
    %v574 = vshrl.u32 %v573, 7
    %v575 = vsub.s32 6, %v574
    %v576 = vrot.slane %v76, %v575
    %v577 = vlaneseq
    %v578 = vshrl.u32 %v577, 7
    %v579 = vsub.s32 2, %v578
    %v580 = vrot.slane %v77, %v579
    %v581 = vlaneseq
    %v582 = vshrl.u32 %v581, 7
    %v583 = vsub.s32 6, %v582
    %v584 = vrot.slane %v77, %v583
    %v585 = vlaneseq
    %v586 = vshrl.u32 %v585, 7
    %v587 = vsub.s32 2, %v586
    %v588 = vrot.slane %v78, %v587
    %v589 = vlaneseq
    %v590 = vshrl.u32 %v589, 7
    %v591 = vsub.s32 6, %v590
    %v592 = vrot.slane %v78, %v591
    %v593 = vlaneseq
    %v594 = vshrl.u32 %v593, 7
    %v595 = vsub.s32 2, %v594
    %v596 = vrot.slane %v79, %v595
    %v597 = vlaneseq
    %v598 = vshrl.u32 %v597, 7
    %v599 = vsub.s32 6, %v598
    %v600 = vrot.slane %v79, %v599
    %v617 = vlaneseq
    %v618 = vshrl.u32 %v617, 7
    %v619 = vsub.s32 2, %v618
    %v620 = vrot.slane %v540, %v619
    %v621 = vlaneseq
    %v622 = vshrl.u32 %v621, 7
    %v623 = vsub.s32 2, %v622
    %v624 = vrot.slane %v544, %v623
    %v625 = vlaneseq
    %v626 = vshrl.u32 %v625, 7
    %v627 = vsub.s32 2, %v626
    %v628 = vrot.slane %v548, %v627
    %v629 = vlaneseq
    %v630 = vshrl.u32 %v629, 7
    %v631 = vsub.s32 2, %v630
    %v632 = vrot.slane %v552, %v631
    %v633 = vlaneseq
    %v634 = vshrl.u32 %v633, 7
    %v635 = vsub.s32 2, %v634
    %v636 = vrot.slane %v556, %v635
    %v637 = vlaneseq
    %v638 = vshrl.u32 %v637, 7
    %v639 = vsub.s32 2, %v638
    %v640 = vrot.slane %v560, %v639
    %v641 = vlaneseq
    %v642 = vshrl.u32 %v641, 7
    %v643 = vsub.s32 2, %v642
    %v644 = vrot.slane %v564, %v643
    %v645 = vlaneseq
    %v646 = vshrl.u32 %v645, 7
    %v647 = vsub.s32 2, %v646
    %v648 = vrot.slane %v568, %v647
    %v649 = vlaneseq
    %v650 = vshrl.u32 %v649, 7
    %v651 = vsub.s32 2, %v650
    %v652 = vrot.slane %v572, %v651
    %v653 = vlaneseq
    %v654 = vshrl.u32 %v653, 7
    %v655 = vsub.s32 2, %v654
    %v656 = vrot.slane %v576, %v655
    %v657 = vlaneseq
    %v658 = vshrl.u32 %v657, 7
    %v659 = vsub.s32 2, %v658
    %v660 = vrot.slane %v580, %v659
    %v661 = vlaneseq
    %v662 = vshrl.u32 %v661, 7
    %v663 = vsub.s32 2, %v662
    %v664 = vrot.slane %v584, %v663
    %v665 = vlaneseq
    %v666 = vshrl.u32 %v665, 7
    %v667 = vsub.s32 2, %v666
    %v668 = vrot.slane %v588, %v667
    %v669 = vlaneseq
    %v670 = vshrl.u32 %v669, 7
    %v671 = vsub.s32 2, %v670
    %v672 = vrot.slane %v592, %v671
    %v673 = vlaneseq
    %v674 = vshrl.u32 %v673, 7
    %v675 = vsub.s32 2, %v674
    %v676 = vrot.slane %v596, %v675
    %v677 = vlaneseq
    %v678 = vshrl.u32 %v677, 7
    %v679 = vsub.s32 2, %v678
    %v680 = vrot.slane %v600, %v679
    %v681 = vmul.f32 %v535, %v620
    %v682 = vmul.f32 %v535, %v624
    %v683 = vmul.f32 %v535, %v628
    %v684 = vmul.f32 %v535, %v632
    %v685 = vmul.f32 %v535, %v636
    %v686 = vmul.f32 %v535, %v640
    %v687 = vmul.f32 %v535, %v644
    %v688 = vmul.f32 %v535, %v648
    %v689 = vmul.f32 %v535, %v652
    %v690 = vmul.f32 %v535, %v656
    %v691 = vmul.f32 %v535, %v660
    %v692 = vmul.f32 %v535, %v664
    %v693 = vmul.f32 %v535, %v668
    %v694 = vmul.f32 %v535, %v672
    %v695 = vmul.f32 %v535, %v676
    %v696 = vmul.f32 %v535, %v680
    %v697 = vadd.f32 %v517, %v681
    %v698 = vadd.f32 %v518, %v682
    %v699 = vadd.f32 %v519, %v683
    %v700 = vadd.f32 %v520, %v684
    %v701 = vadd.f32 %v521, %v685
    %v702 = vadd.f32 %v522, %v686
    %v703 = vadd.f32 %v523, %v687
    %v704 = vadd.f32 %v524, %v688
    %v705 = vadd.f32 %v525, %v689
    %v706 = vadd.f32 %v526, %v690
    %v707 = vadd.f32 %v527, %v691
    %v708 = vadd.f32 %v528, %v692
    %v709 = vadd.f32 %v529, %v693
    %v710 = vadd.f32 %v530, %v694
    %v711 = vadd.f32 %v531, %v695
    %v712 = vadd.f32 %v532, %v696
    %713 = vset.pattern.permute.xlu0 3
    %714 = vperm.xlu0 %713, %v67
    %v715 = vpop.permute.xlu0 %714
    %v717 = vlaneseq
    %v718 = vshrl.u32 %v717, 7
    %v719 = vsub.s32 3, %v718
    %v720 = vrot.slane %v72, %v719
    %v721 = vlaneseq
    %v722 = vshrl.u32 %v721, 7
    %v723 = vsub.s32 7, %v722
    %v724 = vrot.slane %v72, %v723
    %v725 = vlaneseq
    %v726 = vshrl.u32 %v725, 7
    %v727 = vsub.s32 3, %v726
    %v728 = vrot.slane %v73, %v727
    %v729 = vlaneseq
    %v730 = vshrl.u32 %v729, 7
    %v731 = vsub.s32 7, %v730
    %v732 = vrot.slane %v73, %v731
    %v733 = vlaneseq
    %v734 = vshrl.u32 %v733, 7
    %v735 = vsub.s32 3, %v734
    %v736 = vrot.slane %v74, %v735
    %v737 = vlaneseq
    %v738 = vshrl.u32 %v737, 7
    %v739 = vsub.s32 7, %v738
    %v740 = vrot.slane %v74, %v739
    %v741 = vlaneseq
    %v742 = vshrl.u32 %v741, 7
    %v743 = vsub.s32 3, %v742
    %v744 = vrot.slane %v75, %v743
    %v745 = vlaneseq
    %v746 = vshrl.u32 %v745, 7
    %v747 = vsub.s32 7, %v746
    %v748 = vrot.slane %v75, %v747
    %v749 = vlaneseq
    %v750 = vshrl.u32 %v749, 7
    %v751 = vsub.s32 3, %v750
    %v752 = vrot.slane %v76, %v751
    %v753 = vlaneseq
    %v754 = vshrl.u32 %v753, 7
    %v755 = vsub.s32 7, %v754
    %v756 = vrot.slane %v76, %v755
    %v757 = vlaneseq
    %v758 = vshrl.u32 %v757, 7
    %v759 = vsub.s32 3, %v758
    %v760 = vrot.slane %v77, %v759
    %v761 = vlaneseq
    %v762 = vshrl.u32 %v761, 7
    %v763 = vsub.s32 7, %v762
    %v764 = vrot.slane %v77, %v763
    %v765 = vlaneseq
    %v766 = vshrl.u32 %v765, 7
    %v767 = vsub.s32 3, %v766
    %v768 = vrot.slane %v78, %v767
    %v769 = vlaneseq
    %v770 = vshrl.u32 %v769, 7
    %v771 = vsub.s32 7, %v770
    %v772 = vrot.slane %v78, %v771
    %v773 = vlaneseq
    %v774 = vshrl.u32 %v773, 7
    %v775 = vsub.s32 3, %v774
    %v776 = vrot.slane %v79, %v775
    %v777 = vlaneseq
    %v778 = vshrl.u32 %v777, 7
    %v779 = vsub.s32 7, %v778
    %v780 = vrot.slane %v79, %v779
    %v797 = vlaneseq
    %v798 = vshrl.u32 %v797, 7
    %v799 = vsub.s32 3, %v798
    %v800 = vrot.slane %v720, %v799
    %v801 = vlaneseq
    %v802 = vshrl.u32 %v801, 7
    %v803 = vsub.s32 3, %v802
    %v804 = vrot.slane %v724, %v803
    %v805 = vlaneseq
    %v806 = vshrl.u32 %v805, 7
    %v807 = vsub.s32 3, %v806
    %v808 = vrot.slane %v728, %v807
    %v809 = vlaneseq
    %v810 = vshrl.u32 %v809, 7
    %v811 = vsub.s32 3, %v810
    %v812 = vrot.slane %v732, %v811
    %v813 = vlaneseq
    %v814 = vshrl.u32 %v813, 7
    %v815 = vsub.s32 3, %v814
    %v816 = vrot.slane %v736, %v815
    %v817 = vlaneseq
    %v818 = vshrl.u32 %v817, 7
    %v819 = vsub.s32 3, %v818
    %v820 = vrot.slane %v740, %v819
    %v821 = vlaneseq
    %v822 = vshrl.u32 %v821, 7
    %v823 = vsub.s32 3, %v822
    %v824 = vrot.slane %v744, %v823
    %v825 = vlaneseq
    %v826 = vshrl.u32 %v825, 7
    %v827 = vsub.s32 3, %v826
    %v828 = vrot.slane %v748, %v827
    %v829 = vlaneseq
    %v830 = vshrl.u32 %v829, 7
    %v831 = vsub.s32 3, %v830
    %v832 = vrot.slane %v752, %v831
    %v833 = vlaneseq
    %v834 = vshrl.u32 %v833, 7
    %v835 = vsub.s32 3, %v834
    %v836 = vrot.slane %v756, %v835
    %v837 = vlaneseq
    %v838 = vshrl.u32 %v837, 7
    %v839 = vsub.s32 3, %v838
    %v840 = vrot.slane %v760, %v839
    %v841 = vlaneseq
    %v842 = vshrl.u32 %v841, 7
    %v843 = vsub.s32 3, %v842
    %v844 = vrot.slane %v764, %v843
    %v845 = vlaneseq
    %v846 = vshrl.u32 %v845, 7
    %v847 = vsub.s32 3, %v846
    %v848 = vrot.slane %v768, %v847
    %v849 = vlaneseq
    %v850 = vshrl.u32 %v849, 7
    %v851 = vsub.s32 3, %v850
    %v852 = vrot.slane %v772, %v851
    %v853 = vlaneseq
    %v854 = vshrl.u32 %v853, 7
    %v855 = vsub.s32 3, %v854
    %v856 = vrot.slane %v776, %v855
    %v857 = vlaneseq
    %v858 = vshrl.u32 %v857, 7
    %v859 = vsub.s32 3, %v858
    %v860 = vrot.slane %v780, %v859
    %v861 = vmul.f32 %v715, %v800
    %v862 = vmul.f32 %v715, %v804
    %v863 = vmul.f32 %v715, %v808
    %v864 = vmul.f32 %v715, %v812
    %v865 = vmul.f32 %v715, %v816
    %v866 = vmul.f32 %v715, %v820
    %v867 = vmul.f32 %v715, %v824
    %v868 = vmul.f32 %v715, %v828
    %v869 = vmul.f32 %v715, %v832
    %v870 = vmul.f32 %v715, %v836
    %v871 = vmul.f32 %v715, %v840
    %v872 = vmul.f32 %v715, %v844
    %v873 = vmul.f32 %v715, %v848
    %v874 = vmul.f32 %v715, %v852
    %v875 = vmul.f32 %v715, %v856
    %v876 = vmul.f32 %v715, %v860
    %v877 = vadd.f32 %v697, %v861
    %v878 = vadd.f32 %v698, %v862
    %v879 = vadd.f32 %v699, %v863
    %v880 = vadd.f32 %v700, %v864
    %v881 = vadd.f32 %v701, %v865
    %v882 = vadd.f32 %v702, %v866
    %v883 = vadd.f32 %v703, %v867
    %v884 = vadd.f32 %v704, %v868
    %v885 = vadd.f32 %v705, %v869
    %v886 = vadd.f32 %v706, %v870
    %v887 = vadd.f32 %v707, %v871
    %v888 = vadd.f32 %v708, %v872
    %v889 = vadd.f32 %v709, %v873
    %v890 = vadd.f32 %v710, %v874
    %v891 = vadd.f32 %v711, %v875
    %v892 = vadd.f32 %v712, %v876
    %v893 = vmax.f32 %v877, 0.0
    %v894 = vmax.f32 %v878, 0.0
    %v895 = vmax.f32 %v879, 0.0
    %v896 = vmax.f32 %v880, 0.0
    %v897 = vmax.f32 %v881, 0.0
    %v898 = vmax.f32 %v882, 0.0
    %v899 = vmax.f32 %v883, 0.0
    %v900 = vmax.f32 %v884, 0.0
    %v901 = vmax.f32 %v885, 0.0
    %v902 = vmax.f32 %v886, 0.0
    %v903 = vmax.f32 %v887, 0.0
    %v904 = vmax.f32 %v888, 0.0
    %v905 = vmax.f32 %v889, 0.0
    %v906 = vmax.f32 %v890, 0.0
    %v907 = vmax.f32 %v891, 0.0
    %v908 = vmax.f32 %v892, 0.0
    %v909 = vpack.c.bf16 %v893, %v893
    %v910 = vpack.c.bf16 %v894, %v894
    %v911 = vpack.c.bf16 %v895, %v895
    %v912 = vpack.c.bf16 %v896, %v896
    %v913 = vpack.c.bf16 %v897, %v897
    %v914 = vpack.c.bf16 %v898, %v898
    %v915 = vpack.c.bf16 %v899, %v899
    %v916 = vpack.c.bf16 %v900, %v900
    %v917 = vpack.c.bf16 %v901, %v901
    %v918 = vpack.c.bf16 %v902, %v902
    %v919 = vpack.c.bf16 %v903, %v903
    %v920 = vpack.c.bf16 %v904, %v904
    %v921 = vpack.c.bf16 %v905, %v905
    %v922 = vpack.c.bf16 %v906, %v906
    %v923 = vpack.c.bf16 %v907, %v907
    %v924 = vpack.c.bf16 %v908, %v908
    %v925 = vld [vmem:[#allocation5] sm:$0xff]
    %v926 = vld [vmem:[#allocation5 + $0x8] sm:$0xff]
    %v927 = vld [vmem:[#allocation5 + $0x10] sm:$0xff]
    %v928 = vld [vmem:[#allocation5 + $0x18] sm:$0xff]
    %v929 = vld [vmem:[#allocation5 + $0x20] sm:$0xff]
    %v930 = vld [vmem:[#allocation5 + $0x28] sm:$0xff]
    %v931 = vld [vmem:[#allocation5 + $0x30] sm:$0xff]
    %v932 = vld [vmem:[#allocation5 + $0x38] sm:$0xff]
    %v933 = vld [vmem:[#allocation5 + $0x40] sm:$0xff]
    %v934 = vld [vmem:[#allocation5 + $0x48] sm:$0xff]
    %v935 = vld [vmem:[#allocation5 + $0x50] sm:$0xff]
    %v936 = vld [vmem:[#allocation5 + $0x58] sm:$0xff]
    %v937 = vld [vmem:[#allocation5 + $0x60] sm:$0xff]
    %v938 = vld [vmem:[#allocation5 + $0x68] sm:$0xff]
    %v939 = vld [vmem:[#allocation5 + $0x70] sm:$0xff]
    %v940 = vld [vmem:[#allocation5 + $0x78] sm:$0xff]
    %v941 = vld [vmem:[#allocation5 + $0x80] sm:$0xff]
    %v942 = vld [vmem:[#allocation5 + $0x88] sm:$0xff]
    %v943 = vld [vmem:[#allocation5 + $0x90] sm:$0xff]
    %v944 = vld [vmem:[#allocation5 + $0x98] sm:$0xff]
    %v945 = vld [vmem:[#allocation5 + $0xa0] sm:$0xff]
    %v946 = vld [vmem:[#allocation5 + $0xa8] sm:$0xff]
    %v947 = vld [vmem:[#allocation5 + $0xb0] sm:$0xff]
    %v948 = vld [vmem:[#allocation5 + $0xb8] sm:$0xff]
    %v949 = vld [vmem:[#allocation5 + $0xc0] sm:$0xff]
    %v950 = vld [vmem:[#allocation5 + $0xc8] sm:$0xff]
    %v951 = vld [vmem:[#allocation5 + $0xd0] sm:$0xff]
    %v952 = vld [vmem:[#allocation5 + $0xd8] sm:$0xff]
    %v953 = vld [vmem:[#allocation5 + $0xe0] sm:$0xff]
    %v954 = vld [vmem:[#allocation5 + $0xe8] sm:$0xff]
    %v955 = vld [vmem:[#allocation5 + $0xf0] sm:$0xff]
    %v956 = vld [vmem:[#allocation5 + $0xf8] sm:$0xff]
    %v957 = vld [vmem:[#allocation5 + $0x100] sm:$0xff]
    %v958 = vld [vmem:[#allocation5 + $0x108] sm:$0xff]
    %v959 = vld [vmem:[#allocation5 + $0x110] sm:$0xff]
    %v960 = vld [vmem:[#allocation5 + $0x118] sm:$0xff]
    %v961 = vld [vmem:[#allocation5 + $0x120] sm:$0xff]
    %v962 = vld [vmem:[#allocation5 + $0x128] sm:$0xff]
    %v963 = vld [vmem:[#allocation5 + $0x130] sm:$0xff]
    %v964 = vld [vmem:[#allocation5 + $0x138] sm:$0xff]
    %v965 = vld [vmem:[#allocation5 + $0x140] sm:$0xff]
    %v966 = vld [vmem:[#allocation5 + $0x148] sm:$0xff]
    %v967 = vld [vmem:[#allocation5 + $0x150] sm:$0xff]
    %v968 = vld [vmem:[#allocation5 + $0x158] sm:$0xff]
    %v969 = vld [vmem:[#allocation5 + $0x160] sm:$0xff]
    %v970 = vld [vmem:[#allocation5 + $0x168] sm:$0xff]
    %v971 = vld [vmem:[#allocation5 + $0x170] sm:$0xff]
    %v972 = vld [vmem:[#allocation5 + $0x178] sm:$0xff]
    %v973 = vld [vmem:[#allocation5 + $0x180] sm:$0xff]
    %v974 = vld [vmem:[#allocation5 + $0x188] sm:$0xff]
    %v975 = vld [vmem:[#allocation5 + $0x190] sm:$0xff]
    %v976 = vld [vmem:[#allocation5 + $0x198] sm:$0xff]
    %v977 = vld [vmem:[#allocation5 + $0x1a0] sm:$0xff]
    %v978 = vld [vmem:[#allocation5 + $0x1a8] sm:$0xff]
    %v979 = vld [vmem:[#allocation5 + $0x1b0] sm:$0xff]
    %v980 = vld [vmem:[#allocation5 + $0x1b8] sm:$0xff]
    %v981 = vld [vmem:[#allocation5 + $0x1c0] sm:$0xff]
    %v982 = vld [vmem:[#allocation5 + $0x1c8] sm:$0xff]
    %v983 = vld [vmem:[#allocation5 + $0x1d0] sm:$0xff]
    %v984 = vld [vmem:[#allocation5 + $0x1d8] sm:$0xff]
    %v985 = vld [vmem:[#allocation5 + $0x1e0] sm:$0xff]
    %v986 = vld [vmem:[#allocation5 + $0x1e8] sm:$0xff]
    %v987 = vld [vmem:[#allocation5 + $0x1f0] sm:$0xff]
    %v988 = vld [vmem:[#allocation5 + $0x1f8] sm:$0xff]
    %v989 = vld [vmem:[#allocation5 + $0x200] sm:$0xff]
    %v990 = vld [vmem:[#allocation5 + $0x208] sm:$0xff]
    %v991 = vld [vmem:[#allocation5 + $0x210] sm:$0xff]
    %v992 = vld [vmem:[#allocation5 + $0x218] sm:$0xff]
    %v993 = vld [vmem:[#allocation5 + $0x220] sm:$0xff]
    %v994 = vld [vmem:[#allocation5 + $0x228] sm:$0xff]
    %v995 = vld [vmem:[#allocation5 + $0x230] sm:$0xff]
    %v996 = vld [vmem:[#allocation5 + $0x238] sm:$0xff]
    %v997 = vld [vmem:[#allocation5 + $0x240] sm:$0xff]
    %v998 = vld [vmem:[#allocation5 + $0x248] sm:$0xff]
    %v999 = vld [vmem:[#allocation5 + $0x250] sm:$0xff]
    %v1000 = vld [vmem:[#allocation5 + $0x258] sm:$0xff]
    %v1001 = vld [vmem:[#allocation5 + $0x260] sm:$0xff]
    %v1002 = vld [vmem:[#allocation5 + $0x268] sm:$0xff]
    %v1003 = vld [vmem:[#allocation5 + $0x270] sm:$0xff]
    %v1004 = vld [vmem:[#allocation5 + $0x278] sm:$0xff]
    %v1005 = vld [vmem:[#allocation5 + $0x280] sm:$0xff]
    %v1006 = vld [vmem:[#allocation5 + $0x288] sm:$0xff]
    %v1007 = vld [vmem:[#allocation5 + $0x290] sm:$0xff]
    %v1008 = vld [vmem:[#allocation5 + $0x298] sm:$0xff]
    %v1009 = vld [vmem:[#allocation5 + $0x2a0] sm:$0xff]
    %v1010 = vld [vmem:[#allocation5 + $0x2a8] sm:$0xff]
    %v1011 = vld [vmem:[#allocation5 + $0x2b0] sm:$0xff]
    %v1012 = vld [vmem:[#allocation5 + $0x2b8] sm:$0xff]
    %v1013 = vld [vmem:[#allocation5 + $0x2c0] sm:$0xff]
    %v1014 = vld [vmem:[#allocation5 + $0x2c8] sm:$0xff]
    %v1015 = vld [vmem:[#allocation5 + $0x2d0] sm:$0xff]
    %v1016 = vld [vmem:[#allocation5 + $0x2d8] sm:$0xff]
    %v1017 = vld [vmem:[#allocation5 + $0x2e0] sm:$0xff]
    %v1018 = vld [vmem:[#allocation5 + $0x2e8] sm:$0xff]
    %v1019 = vld [vmem:[#allocation5 + $0x2f0] sm:$0xff]
    %v1020 = vld [vmem:[#allocation5 + $0x2f8] sm:$0xff]
    %v1021 = vld [vmem:[#allocation5 + $0x300] sm:$0xff]
    %v1022 = vld [vmem:[#allocation5 + $0x308] sm:$0xff]
    %v1023 = vld [vmem:[#allocation5 + $0x310] sm:$0xff]
    %v1024 = vld [vmem:[#allocation5 + $0x318] sm:$0xff]
    %v1025 = vld [vmem:[#allocation5 + $0x320] sm:$0xff]
    %v1026 = vld [vmem:[#allocation5 + $0x328] sm:$0xff]
    %v1027 = vld [vmem:[#allocation5 + $0x330] sm:$0xff]
    %v1028 = vld [vmem:[#allocation5 + $0x338] sm:$0xff]
    %v1029 = vld [vmem:[#allocation5 + $0x340] sm:$0xff]
    %v1030 = vld [vmem:[#allocation5 + $0x348] sm:$0xff]
    %v1031 = vld [vmem:[#allocation5 + $0x350] sm:$0xff]
    %v1032 = vld [vmem:[#allocation5 + $0x358] sm:$0xff]
    %v1033 = vld [vmem:[#allocation5 + $0x360] sm:$0xff]
    %v1034 = vld [vmem:[#allocation5 + $0x368] sm:$0xff]
    %v1035 = vld [vmem:[#allocation5 + $0x370] sm:$0xff]
    %v1036 = vld [vmem:[#allocation5 + $0x378] sm:$0xff]
    %v1037 = vld [vmem:[#allocation5 + $0x380] sm:$0xff]
    %v1038 = vld [vmem:[#allocation5 + $0x388] sm:$0xff]
    %v1039 = vld [vmem:[#allocation5 + $0x390] sm:$0xff]
    %v1040 = vld [vmem:[#allocation5 + $0x398] sm:$0xff]
    %v1041 = vld [vmem:[#allocation5 + $0x3a0] sm:$0xff]
    %v1042 = vld [vmem:[#allocation5 + $0x3a8] sm:$0xff]
    %v1043 = vld [vmem:[#allocation5 + $0x3b0] sm:$0xff]
    %v1044 = vld [vmem:[#allocation5 + $0x3b8] sm:$0xff]
    %v1045 = vld [vmem:[#allocation5 + $0x3c0] sm:$0xff]
    %v1046 = vld [vmem:[#allocation5 + $0x3c8] sm:$0xff]
    %v1047 = vld [vmem:[#allocation5 + $0x3d0] sm:$0xff]
    %v1048 = vld [vmem:[#allocation5 + $0x3d8] sm:$0xff]
    %v1049 = vld [vmem:[#allocation5 + $0x3e0] sm:$0xff]
    %v1050 = vld [vmem:[#allocation5 + $0x3e8] sm:$0xff]
    %v1051 = vld [vmem:[#allocation5 + $0x3f0] sm:$0xff]
    %v1052 = vld [vmem:[#allocation5 + $0x3f8] sm:$0xff]
    %v1053 = vld [vmem:[#allocation5 + $0x400] sm:$0xff]
    %v1054 = vld [vmem:[#allocation5 + $0x408] sm:$0xff]
    %v1055 = vld [vmem:[#allocation5 + $0x410] sm:$0xff]
    %v1056 = vld [vmem:[#allocation5 + $0x418] sm:$0xff]
    %v1057 = vld [vmem:[#allocation5 + $0x420] sm:$0xff]
    %v1058 = vld [vmem:[#allocation5 + $0x428] sm:$0xff]
    %v1059 = vld [vmem:[#allocation5 + $0x430] sm:$0xff]
    %v1060 = vld [vmem:[#allocation5 + $0x438] sm:$0xff]
    %v1061 = vld [vmem:[#allocation5 + $0x440] sm:$0xff]
    %v1062 = vld [vmem:[#allocation5 + $0x448] sm:$0xff]
    %v1063 = vld [vmem:[#allocation5 + $0x450] sm:$0xff]
    %v1064 = vld [vmem:[#allocation5 + $0x458] sm:$0xff]
    %v1065 = vld [vmem:[#allocation5 + $0x460] sm:$0xff]
    %v1066 = vld [vmem:[#allocation5 + $0x468] sm:$0xff]
    %v1067 = vld [vmem:[#allocation5 + $0x470] sm:$0xff]
    %v1068 = vld [vmem:[#allocation5 + $0x478] sm:$0xff]
    %v1069 = vld [vmem:[#allocation5 + $0x480] sm:$0xff]
    %v1070 = vld [vmem:[#allocation5 + $0x488] sm:$0xff]
    %v1071 = vld [vmem:[#allocation5 + $0x490] sm:$0xff]
    %v1072 = vld [vmem:[#allocation5 + $0x498] sm:$0xff]
    %v1073 = vld [vmem:[#allocation5 + $0x4a0] sm:$0xff]
    %v1074 = vld [vmem:[#allocation5 + $0x4a8] sm:$0xff]
    %v1075 = vld [vmem:[#allocation5 + $0x4b0] sm:$0xff]
    %v1076 = vld [vmem:[#allocation5 + $0x4b8] sm:$0xff]
    %v1077 = vld [vmem:[#allocation5 + $0x4c0] sm:$0xff]
    %v1078 = vld [vmem:[#allocation5 + $0x4c8] sm:$0xff]
    %v1079 = vld [vmem:[#allocation5 + $0x4d0] sm:$0xff]
    %v1080 = vld [vmem:[#allocation5 + $0x4d8] sm:$0xff]
    %v1081 = vld [vmem:[#allocation5 + $0x4e0] sm:$0xff]
    %v1082 = vld [vmem:[#allocation5 + $0x4e8] sm:$0xff]
    %v1083 = vld [vmem:[#allocation5 + $0x4f0] sm:$0xff]
    %v1084 = vld [vmem:[#allocation5 + $0x4f8] sm:$0xff]
    %v1085 = vld [vmem:[#allocation5 + $0x500] sm:$0xff]
    %v1086 = vld [vmem:[#allocation5 + $0x508] sm:$0xff]
    %v1087 = vld [vmem:[#allocation5 + $0x510] sm:$0xff]
    %v1088 = vld [vmem:[#allocation5 + $0x518] sm:$0xff]
    %v1089 = vld [vmem:[#allocation5 + $0x520] sm:$0xff]
    %v1090 = vld [vmem:[#allocation5 + $0x528] sm:$0xff]
    %v1091 = vld [vmem:[#allocation5 + $0x530] sm:$0xff]
    %v1092 = vld [vmem:[#allocation5 + $0x538] sm:$0xff]
    %v1093 = vld [vmem:[#allocation5 + $0x540] sm:$0xff]
    %v1094 = vld [vmem:[#allocation5 + $0x548] sm:$0xff]
    %v1095 = vld [vmem:[#allocation5 + $0x550] sm:$0xff]
    %v1096 = vld [vmem:[#allocation5 + $0x558] sm:$0xff]
    %v1097 = vld [vmem:[#allocation5 + $0x560] sm:$0xff]
    %v1098 = vld [vmem:[#allocation5 + $0x568] sm:$0xff]
    %v1099 = vld [vmem:[#allocation5 + $0x570] sm:$0xff]
    %v1100 = vld [vmem:[#allocation5 + $0x578] sm:$0xff]
    %v1101 = vld [vmem:[#allocation5 + $0x580] sm:$0xff]
    %v1102 = vld [vmem:[#allocation5 + $0x588] sm:$0xff]
    %v1103 = vld [vmem:[#allocation5 + $0x590] sm:$0xff]
    %v1104 = vld [vmem:[#allocation5 + $0x598] sm:$0xff]
    %v1105 = vld [vmem:[#allocation5 + $0x5a0] sm:$0xff]
    %v1106 = vld [vmem:[#allocation5 + $0x5a8] sm:$0xff]
    %v1107 = vld [vmem:[#allocation5 + $0x5b0] sm:$0xff]
    %v1108 = vld [vmem:[#allocation5 + $0x5b8] sm:$0xff]
    %v1109 = vld [vmem:[#allocation5 + $0x5c0] sm:$0xff]
    %v1110 = vld [vmem:[#allocation5 + $0x5c8] sm:$0xff]
    %v1111 = vld [vmem:[#allocation5 + $0x5d0] sm:$0xff]
    %v1112 = vld [vmem:[#allocation5 + $0x5d8] sm:$0xff]
    %v1113 = vld [vmem:[#allocation5 + $0x5e0] sm:$0xff]
    %v1114 = vld [vmem:[#allocation5 + $0x5e8] sm:$0xff]
    %v1115 = vld [vmem:[#allocation5 + $0x5f0] sm:$0xff]
    %v1116 = vld [vmem:[#allocation5 + $0x5f8] sm:$0xff]
    %v1117 = vld [vmem:[#allocation5 + $0x600] sm:$0xff]
    %v1118 = vld [vmem:[#allocation5 + $0x608] sm:$0xff]
    %v1119 = vld [vmem:[#allocation5 + $0x610] sm:$0xff]
    %v1120 = vld [vmem:[#allocation5 + $0x618] sm:$0xff]
    %v1121 = vld [vmem:[#allocation5 + $0x620] sm:$0xff]
    %v1122 = vld [vmem:[#allocation5 + $0x628] sm:$0xff]
    %v1123 = vld [vmem:[#allocation5 + $0x630] sm:$0xff]
    %v1124 = vld [vmem:[#allocation5 + $0x638] sm:$0xff]
    %v1125 = vld [vmem:[#allocation5 + $0x640] sm:$0xff]
    %v1126 = vld [vmem:[#allocation5 + $0x648] sm:$0xff]
    %v1127 = vld [vmem:[#allocation5 + $0x650] sm:$0xff]
    %v1128 = vld [vmem:[#allocation5 + $0x658] sm:$0xff]
    %v1129 = vld [vmem:[#allocation5 + $0x660] sm:$0xff]
    %v1130 = vld [vmem:[#allocation5 + $0x668] sm:$0xff]
    %v1131 = vld [vmem:[#allocation5 + $0x670] sm:$0xff]
    %v1132 = vld [vmem:[#allocation5 + $0x678] sm:$0xff]
    %v1133 = vld [vmem:[#allocation5 + $0x680] sm:$0xff]
    %v1134 = vld [vmem:[#allocation5 + $0x688] sm:$0xff]
    %v1135 = vld [vmem:[#allocation5 + $0x690] sm:$0xff]
    %v1136 = vld [vmem:[#allocation5 + $0x698] sm:$0xff]
    %v1137 = vld [vmem:[#allocation5 + $0x6a0] sm:$0xff]
    %v1138 = vld [vmem:[#allocation5 + $0x6a8] sm:$0xff]
    %v1139 = vld [vmem:[#allocation5 + $0x6b0] sm:$0xff]
    %v1140 = vld [vmem:[#allocation5 + $0x6b8] sm:$0xff]
    %v1141 = vld [vmem:[#allocation5 + $0x6c0] sm:$0xff]
    %v1142 = vld [vmem:[#allocation5 + $0x6c8] sm:$0xff]
    %v1143 = vld [vmem:[#allocation5 + $0x6d0] sm:$0xff]
    %v1144 = vld [vmem:[#allocation5 + $0x6d8] sm:$0xff]
    %v1145 = vld [vmem:[#allocation5 + $0x6e0] sm:$0xff]
    %v1146 = vld [vmem:[#allocation5 + $0x6e8] sm:$0xff]
    %v1147 = vld [vmem:[#allocation5 + $0x6f0] sm:$0xff]
    %v1148 = vld [vmem:[#allocation5 + $0x6f8] sm:$0xff]
    %v1149 = vld [vmem:[#allocation5 + $0x700] sm:$0xff]
    %v1150 = vld [vmem:[#allocation5 + $0x708] sm:$0xff]
    %v1151 = vld [vmem:[#allocation5 + $0x710] sm:$0xff]
    %v1152 = vld [vmem:[#allocation5 + $0x718] sm:$0xff]
    %v1153 = vld [vmem:[#allocation5 + $0x720] sm:$0xff]
    %v1154 = vld [vmem:[#allocation5 + $0x728] sm:$0xff]
    %v1155 = vld [vmem:[#allocation5 + $0x730] sm:$0xff]
    %v1156 = vld [vmem:[#allocation5 + $0x738] sm:$0xff]
    %v1157 = vld [vmem:[#allocation5 + $0x740] sm:$0xff]
    %v1158 = vld [vmem:[#allocation5 + $0x748] sm:$0xff]
    %v1159 = vld [vmem:[#allocation5 + $0x750] sm:$0xff]
    %v1160 = vld [vmem:[#allocation5 + $0x758] sm:$0xff]
    %v1161 = vld [vmem:[#allocation5 + $0x760] sm:$0xff]
    %v1162 = vld [vmem:[#allocation5 + $0x768] sm:$0xff]
    %v1163 = vld [vmem:[#allocation5 + $0x770] sm:$0xff]
    %v1164 = vld [vmem:[#allocation5 + $0x778] sm:$0xff]
    %v1165 = vld [vmem:[#allocation5 + $0x780] sm:$0xff]
    %v1166 = vld [vmem:[#allocation5 + $0x788] sm:$0xff]
    %v1167 = vld [vmem:[#allocation5 + $0x790] sm:$0xff]
    %v1168 = vld [vmem:[#allocation5 + $0x798] sm:$0xff]
    %v1169 = vld [vmem:[#allocation5 + $0x7a0] sm:$0xff]
    %v1170 = vld [vmem:[#allocation5 + $0x7a8] sm:$0xff]
    %v1171 = vld [vmem:[#allocation5 + $0x7b0] sm:$0xff]
    %v1172 = vld [vmem:[#allocation5 + $0x7b8] sm:$0xff]
    %v1173 = vld [vmem:[#allocation5 + $0x7c0] sm:$0xff]
    %v1174 = vld [vmem:[#allocation5 + $0x7c8] sm:$0xff]
    %v1175 = vld [vmem:[#allocation5 + $0x7d0] sm:$0xff]
    %v1176 = vld [vmem:[#allocation5 + $0x7d8] sm:$0xff]
    %v1177 = vld [vmem:[#allocation5 + $0x7e0] sm:$0xff]
    %v1178 = vld [vmem:[#allocation5 + $0x7e8] sm:$0xff]
    %v1179 = vld [vmem:[#allocation5 + $0x7f0] sm:$0xff]
    %v1180 = vld [vmem:[#allocation5 + $0x7f8] sm:$0xff]
    %v1181 = vld [vmem:[%s4] sm:$0x3]
    %v1183 = vlaneseq
    %v1184 = vshrl.u32 %v1183, 7
    %v1185 = vsub.s32 0, %v1184
    %v1186 = vrot.slane %v1181, %v1185
    %v1187 = vlaneseq
    %v1188 = vshrl.u32 %v1187, 7
    %v1189 = vsub.s32 1, %v1188
    %v1190 = vrot.slane %v1181, %v1189
    %v1449 = vunpack.c.l.b16 %v925
    %v1450 = vunpack.c.h.b16 %v925
    %v1451 = vunpack.c.l.b16 %v926
    %v1452 = vunpack.c.h.b16 %v926
    %v1453 = vunpack.c.l.b16 %v927
    %v1454 = vunpack.c.h.b16 %v927
    %v1455 = vunpack.c.l.b16 %v928
    %v1456 = vunpack.c.h.b16 %v928
    %v1457 = vunpack.c.l.b16 %v929
    %v1458 = vunpack.c.h.b16 %v929
    %v1459 = vunpack.c.l.b16 %v930
    %v1460 = vunpack.c.h.b16 %v930
    %v1461 = vunpack.c.l.b16 %v931
    %v1462 = vunpack.c.h.b16 %v931
    %v1463 = vunpack.c.l.b16 %v932
    %v1464 = vunpack.c.h.b16 %v932
    %v1465 = vunpack.c.l.b16 %v933
    %v1466 = vunpack.c.h.b16 %v933
    %v1467 = vunpack.c.l.b16 %v934
    %v1468 = vunpack.c.h.b16 %v934
    %v1469 = vunpack.c.l.b16 %v935
    %v1470 = vunpack.c.h.b16 %v935
    %v1471 = vunpack.c.l.b16 %v936
    %v1472 = vunpack.c.h.b16 %v936
    %v1473 = vunpack.c.l.b16 %v937
    %v1474 = vunpack.c.h.b16 %v937
    %v1475 = vunpack.c.l.b16 %v938
    %v1476 = vunpack.c.h.b16 %v938
    %v1477 = vunpack.c.l.b16 %v939
    %v1478 = vunpack.c.h.b16 %v939
    %v1479 = vunpack.c.l.b16 %v940
    %v1480 = vunpack.c.h.b16 %v940
    %v1481 = vunpack.c.l.b16 %v941
    %v1482 = vunpack.c.h.b16 %v941
    %v1483 = vunpack.c.l.b16 %v942
    %v1484 = vunpack.c.h.b16 %v942
    %v1485 = vunpack.c.l.b16 %v943
    %v1486 = vunpack.c.h.b16 %v943
    %v1487 = vunpack.c.l.b16 %v944
    %v1488 = vunpack.c.h.b16 %v944
    %v1489 = vunpack.c.l.b16 %v945
    %v1490 = vunpack.c.h.b16 %v945
    %v1491 = vunpack.c.l.b16 %v946
    %v1492 = vunpack.c.h.b16 %v946
    %v1493 = vunpack.c.l.b16 %v947
    %v1494 = vunpack.c.h.b16 %v947
    %v1495 = vunpack.c.l.b16 %v948
    %v1496 = vunpack.c.h.b16 %v948
    %v1497 = vunpack.c.l.b16 %v949
    %v1498 = vunpack.c.h.b16 %v949
    %v1499 = vunpack.c.l.b16 %v950
    %v1500 = vunpack.c.h.b16 %v950
    %v1501 = vunpack.c.l.b16 %v951
    %v1502 = vunpack.c.h.b16 %v951
    %v1503 = vunpack.c.l.b16 %v952
    %v1504 = vunpack.c.h.b16 %v952
    %v1505 = vunpack.c.l.b16 %v953
    %v1506 = vunpack.c.h.b16 %v953
    %v1507 = vunpack.c.l.b16 %v954
    %v1508 = vunpack.c.h.b16 %v954
    %v1509 = vunpack.c.l.b16 %v955
    %v1510 = vunpack.c.h.b16 %v955
    %v1511 = vunpack.c.l.b16 %v956
    %v1512 = vunpack.c.h.b16 %v956
    %v1513 = vunpack.c.l.b16 %v957
    %v1514 = vunpack.c.h.b16 %v957
    %v1515 = vunpack.c.l.b16 %v958
    %v1516 = vunpack.c.h.b16 %v958
    %v1517 = vunpack.c.l.b16 %v959
    %v1518 = vunpack.c.h.b16 %v959
    %v1519 = vunpack.c.l.b16 %v960
    %v1520 = vunpack.c.h.b16 %v960
    %v1521 = vunpack.c.l.b16 %v961
    %v1522 = vunpack.c.h.b16 %v961
    %v1523 = vunpack.c.l.b16 %v962
    %v1524 = vunpack.c.h.b16 %v962
    %v1525 = vunpack.c.l.b16 %v963
    %v1526 = vunpack.c.h.b16 %v963
    %v1527 = vunpack.c.l.b16 %v964
    %v1528 = vunpack.c.h.b16 %v964
    %v1529 = vunpack.c.l.b16 %v965
    %v1530 = vunpack.c.h.b16 %v965
    %v1531 = vunpack.c.l.b16 %v966
    %v1532 = vunpack.c.h.b16 %v966
    %v1533 = vunpack.c.l.b16 %v967
    %v1534 = vunpack.c.h.b16 %v967
    %v1535 = vunpack.c.l.b16 %v968
    %v1536 = vunpack.c.h.b16 %v968
    %v1537 = vunpack.c.l.b16 %v969
    %v1538 = vunpack.c.h.b16 %v969
    %v1539 = vunpack.c.l.b16 %v970
    %v1540 = vunpack.c.h.b16 %v970
    %v1541 = vunpack.c.l.b16 %v971
    %v1542 = vunpack.c.h.b16 %v971
    %v1543 = vunpack.c.l.b16 %v972
    %v1544 = vunpack.c.h.b16 %v972
    %v1545 = vunpack.c.l.b16 %v973
    %v1546 = vunpack.c.h.b16 %v973
    %v1547 = vunpack.c.l.b16 %v974
    %v1548 = vunpack.c.h.b16 %v974
    %v1549 = vunpack.c.l.b16 %v975
    %v1550 = vunpack.c.h.b16 %v975
    %v1551 = vunpack.c.l.b16 %v976
    %v1552 = vunpack.c.h.b16 %v976
    %v1553 = vunpack.c.l.b16 %v977
    %v1554 = vunpack.c.h.b16 %v977
    %v1555 = vunpack.c.l.b16 %v978
    %v1556 = vunpack.c.h.b16 %v978
    %v1557 = vunpack.c.l.b16 %v979
    %v1558 = vunpack.c.h.b16 %v979
    %v1559 = vunpack.c.l.b16 %v980
    %v1560 = vunpack.c.h.b16 %v980
    %v1561 = vunpack.c.l.b16 %v981
    %v1562 = vunpack.c.h.b16 %v981
    %v1563 = vunpack.c.l.b16 %v982
    %v1564 = vunpack.c.h.b16 %v982
    %v1565 = vunpack.c.l.b16 %v983
    %v1566 = vunpack.c.h.b16 %v983
    %v1567 = vunpack.c.l.b16 %v984
    %v1568 = vunpack.c.h.b16 %v984
    %v1569 = vunpack.c.l.b16 %v985
    %v1570 = vunpack.c.h.b16 %v985
    %v1571 = vunpack.c.l.b16 %v986
    %v1572 = vunpack.c.h.b16 %v986
    %v1573 = vunpack.c.l.b16 %v987
    %v1574 = vunpack.c.h.b16 %v987
    %v1575 = vunpack.c.l.b16 %v988
    %v1576 = vunpack.c.h.b16 %v988
    %v1577 = vunpack.c.l.b16 %v989
    %v1578 = vunpack.c.h.b16 %v989
    %v1579 = vunpack.c.l.b16 %v990
    %v1580 = vunpack.c.h.b16 %v990
    %v1581 = vunpack.c.l.b16 %v991
    %v1582 = vunpack.c.h.b16 %v991
    %v1583 = vunpack.c.l.b16 %v992
    %v1584 = vunpack.c.h.b16 %v992
    %v1585 = vunpack.c.l.b16 %v993
    %v1586 = vunpack.c.h.b16 %v993
    %v1587 = vunpack.c.l.b16 %v994
    %v1588 = vunpack.c.h.b16 %v994
    %v1589 = vunpack.c.l.b16 %v995
    %v1590 = vunpack.c.h.b16 %v995
    %v1591 = vunpack.c.l.b16 %v996
    %v1592 = vunpack.c.h.b16 %v996
    %v1593 = vunpack.c.l.b16 %v997
    %v1594 = vunpack.c.h.b16 %v997
    %v1595 = vunpack.c.l.b16 %v998
    %v1596 = vunpack.c.h.b16 %v998
    %v1597 = vunpack.c.l.b16 %v999
    %v1598 = vunpack.c.h.b16 %v999
    %v1599 = vunpack.c.l.b16 %v1000
    %v1600 = vunpack.c.h.b16 %v1000
    %v1601 = vunpack.c.l.b16 %v1001
    %v1602 = vunpack.c.h.b16 %v1001
    %v1603 = vunpack.c.l.b16 %v1002
    %v1604 = vunpack.c.h.b16 %v1002
    %v1605 = vunpack.c.l.b16 %v1003
    %v1606 = vunpack.c.h.b16 %v1003
    %v1607 = vunpack.c.l.b16 %v1004
    %v1608 = vunpack.c.h.b16 %v1004
    %v1609 = vunpack.c.l.b16 %v1005
    %v1610 = vunpack.c.h.b16 %v1005
    %v1611 = vunpack.c.l.b16 %v1006
    %v1612 = vunpack.c.h.b16 %v1006
    %v1613 = vunpack.c.l.b16 %v1007
    %v1614 = vunpack.c.h.b16 %v1007
    %v1615 = vunpack.c.l.b16 %v1008
    %v1616 = vunpack.c.h.b16 %v1008
    %v1617 = vunpack.c.l.b16 %v1009
    %v1618 = vunpack.c.h.b16 %v1009
    %v1619 = vunpack.c.l.b16 %v1010
    %v1620 = vunpack.c.h.b16 %v1010
    %v1621 = vunpack.c.l.b16 %v1011
    %v1622 = vunpack.c.h.b16 %v1011
    %v1623 = vunpack.c.l.b16 %v1012
    %v1624 = vunpack.c.h.b16 %v1012
    %v1625 = vunpack.c.l.b16 %v1013
    %v1626 = vunpack.c.h.b16 %v1013
    %v1627 = vunpack.c.l.b16 %v1014
    %v1628 = vunpack.c.h.b16 %v1014
    %v1629 = vunpack.c.l.b16 %v1015
    %v1630 = vunpack.c.h.b16 %v1015
    %v1631 = vunpack.c.l.b16 %v1016
    %v1632 = vunpack.c.h.b16 %v1016
    %v1633 = vunpack.c.l.b16 %v1017
    %v1634 = vunpack.c.h.b16 %v1017
    %v1635 = vunpack.c.l.b16 %v1018
    %v1636 = vunpack.c.h.b16 %v1018
    %v1637 = vunpack.c.l.b16 %v1019
    %v1638 = vunpack.c.h.b16 %v1019
    %v1639 = vunpack.c.l.b16 %v1020
    %v1640 = vunpack.c.h.b16 %v1020
    %v1641 = vunpack.c.l.b16 %v1021
    %v1642 = vunpack.c.h.b16 %v1021
    %v1643 = vunpack.c.l.b16 %v1022
    %v1644 = vunpack.c.h.b16 %v1022
    %v1645 = vunpack.c.l.b16 %v1023
    %v1646 = vunpack.c.h.b16 %v1023
    %v1647 = vunpack.c.l.b16 %v1024
    %v1648 = vunpack.c.h.b16 %v1024
    %v1649 = vunpack.c.l.b16 %v1025
    %v1650 = vunpack.c.h.b16 %v1025
    %v1651 = vunpack.c.l.b16 %v1026
    %v1652 = vunpack.c.h.b16 %v1026
    %v1653 = vunpack.c.l.b16 %v1027
    %v1654 = vunpack.c.h.b16 %v1027
    %v1655 = vunpack.c.l.b16 %v1028
    %v1656 = vunpack.c.h.b16 %v1028
    %v1657 = vunpack.c.l.b16 %v1029
    %v1658 = vunpack.c.h.b16 %v1029
    %v1659 = vunpack.c.l.b16 %v1030
    %v1660 = vunpack.c.h.b16 %v1030
    %v1661 = vunpack.c.l.b16 %v1031
    %v1662 = vunpack.c.h.b16 %v1031
    %v1663 = vunpack.c.l.b16 %v1032
    %v1664 = vunpack.c.h.b16 %v1032
    %v1665 = vunpack.c.l.b16 %v1033
    %v1666 = vunpack.c.h.b16 %v1033
    %v1667 = vunpack.c.l.b16 %v1034
    %v1668 = vunpack.c.h.b16 %v1034
    %v1669 = vunpack.c.l.b16 %v1035
    %v1670 = vunpack.c.h.b16 %v1035
    %v1671 = vunpack.c.l.b16 %v1036
    %v1672 = vunpack.c.h.b16 %v1036
    %v1673 = vunpack.c.l.b16 %v1037
    %v1674 = vunpack.c.h.b16 %v1037
    %v1675 = vunpack.c.l.b16 %v1038
    %v1676 = vunpack.c.h.b16 %v1038
    %v1677 = vunpack.c.l.b16 %v1039
    %v1678 = vunpack.c.h.b16 %v1039
    %v1679 = vunpack.c.l.b16 %v1040
    %v1680 = vunpack.c.h.b16 %v1040
    %v1681 = vunpack.c.l.b16 %v1041
    %v1682 = vunpack.c.h.b16 %v1041
    %v1683 = vunpack.c.l.b16 %v1042
    %v1684 = vunpack.c.h.b16 %v1042
    %v1685 = vunpack.c.l.b16 %v1043
    %v1686 = vunpack.c.h.b16 %v1043
    %v1687 = vunpack.c.l.b16 %v1044
    %v1688 = vunpack.c.h.b16 %v1044
    %v1689 = vunpack.c.l.b16 %v1045
    %v1690 = vunpack.c.h.b16 %v1045
    %v1691 = vunpack.c.l.b16 %v1046
    %v1692 = vunpack.c.h.b16 %v1046
    %v1693 = vunpack.c.l.b16 %v1047
    %v1694 = vunpack.c.h.b16 %v1047
    %v1695 = vunpack.c.l.b16 %v1048
    %v1696 = vunpack.c.h.b16 %v1048
    %v1697 = vunpack.c.l.b16 %v1049
    %v1698 = vunpack.c.h.b16 %v1049
    %v1699 = vunpack.c.l.b16 %v1050
    %v1700 = vunpack.c.h.b16 %v1050
    %v1701 = vunpack.c.l.b16 %v1051
    %v1702 = vunpack.c.h.b16 %v1051
    %v1703 = vunpack.c.l.b16 %v1052
    %v1704 = vunpack.c.h.b16 %v1052
    %v1705 = vunpack.c.l.b16 %v1053
    %v1706 = vunpack.c.h.b16 %v1053
    %v1707 = vunpack.c.l.b16 %v1054
    %v1708 = vunpack.c.h.b16 %v1054
    %v1709 = vunpack.c.l.b16 %v1055
    %v1710 = vunpack.c.h.b16 %v1055
    %v1711 = vunpack.c.l.b16 %v1056
    %v1712 = vunpack.c.h.b16 %v1056
    %v1713 = vunpack.c.l.b16 %v1057
    %v1714 = vunpack.c.h.b16 %v1057
    %v1715 = vunpack.c.l.b16 %v1058
    %v1716 = vunpack.c.h.b16 %v1058
    %v1717 = vunpack.c.l.b16 %v1059
    %v1718 = vunpack.c.h.b16 %v1059
    %v1719 = vunpack.c.l.b16 %v1060
    %v1720 = vunpack.c.h.b16 %v1060
    %v1721 = vunpack.c.l.b16 %v1061
    %v1722 = vunpack.c.h.b16 %v1061
    %v1723 = vunpack.c.l.b16 %v1062
    %v1724 = vunpack.c.h.b16 %v1062
    %v1725 = vunpack.c.l.b16 %v1063
    %v1726 = vunpack.c.h.b16 %v1063
    %v1727 = vunpack.c.l.b16 %v1064
    %v1728 = vunpack.c.h.b16 %v1064
    %v1729 = vunpack.c.l.b16 %v1065
    %v1730 = vunpack.c.h.b16 %v1065
    %v1731 = vunpack.c.l.b16 %v1066
    %v1732 = vunpack.c.h.b16 %v1066
    %v1733 = vunpack.c.l.b16 %v1067
    %v1734 = vunpack.c.h.b16 %v1067
    %v1735 = vunpack.c.l.b16 %v1068
    %v1736 = vunpack.c.h.b16 %v1068
    %v1737 = vunpack.c.l.b16 %v1069
    %v1738 = vunpack.c.h.b16 %v1069
    %v1739 = vunpack.c.l.b16 %v1070
    %v1740 = vunpack.c.h.b16 %v1070
    %v1741 = vunpack.c.l.b16 %v1071
    %v1742 = vunpack.c.h.b16 %v1071
    %v1743 = vunpack.c.l.b16 %v1072
    %v1744 = vunpack.c.h.b16 %v1072
    %v1745 = vunpack.c.l.b16 %v1073
    %v1746 = vunpack.c.h.b16 %v1073
    %v1747 = vunpack.c.l.b16 %v1074
    %v1748 = vunpack.c.h.b16 %v1074
    %v1749 = vunpack.c.l.b16 %v1075
    %v1750 = vunpack.c.h.b16 %v1075
    %v1751 = vunpack.c.l.b16 %v1076
    %v1752 = vunpack.c.h.b16 %v1076
    %v1753 = vunpack.c.l.b16 %v1077
    %v1754 = vunpack.c.h.b16 %v1077
    %v1755 = vunpack.c.l.b16 %v1078
    %v1756 = vunpack.c.h.b16 %v1078
    %v1757 = vunpack.c.l.b16 %v1079
    %v1758 = vunpack.c.h.b16 %v1079
    %v1759 = vunpack.c.l.b16 %v1080
    %v1760 = vunpack.c.h.b16 %v1080
    %v1761 = vunpack.c.l.b16 %v1081
    %v1762 = vunpack.c.h.b16 %v1081
    %v1763 = vunpack.c.l.b16 %v1082
    %v1764 = vunpack.c.h.b16 %v1082
    %v1765 = vunpack.c.l.b16 %v1083
    %v1766 = vunpack.c.h.b16 %v1083
    %v1767 = vunpack.c.l.b16 %v1084
    %v1768 = vunpack.c.h.b16 %v1084
    %v1769 = vunpack.c.l.b16 %v1085
    %v1770 = vunpack.c.h.b16 %v1085
    %v1771 = vunpack.c.l.b16 %v1086
    %v1772 = vunpack.c.h.b16 %v1086
    %v1773 = vunpack.c.l.b16 %v1087
    %v1774 = vunpack.c.h.b16 %v1087
    %v1775 = vunpack.c.l.b16 %v1088
    %v1776 = vunpack.c.h.b16 %v1088
    %v1777 = vunpack.c.l.b16 %v1089
    %v1778 = vunpack.c.h.b16 %v1089
    %v1779 = vunpack.c.l.b16 %v1090
    %v1780 = vunpack.c.h.b16 %v1090
    %v1781 = vunpack.c.l.b16 %v1091
    %v1782 = vunpack.c.h.b16 %v1091
    %v1783 = vunpack.c.l.b16 %v1092
    %v1784 = vunpack.c.h.b16 %v1092
    %v1785 = vunpack.c.l.b16 %v1093
    %v1786 = vunpack.c.h.b16 %v1093
    %v1787 = vunpack.c.l.b16 %v1094
    %v1788 = vunpack.c.h.b16 %v1094
    %v1789 = vunpack.c.l.b16 %v1095
    %v1790 = vunpack.c.h.b16 %v1095
    %v1791 = vunpack.c.l.b16 %v1096
    %v1792 = vunpack.c.h.b16 %v1096
    %v1793 = vunpack.c.l.b16 %v1097
    %v1794 = vunpack.c.h.b16 %v1097
    %v1795 = vunpack.c.l.b16 %v1098
    %v1796 = vunpack.c.h.b16 %v1098
    %v1797 = vunpack.c.l.b16 %v1099
    %v1798 = vunpack.c.h.b16 %v1099
    %v1799 = vunpack.c.l.b16 %v1100
    %v1800 = vunpack.c.h.b16 %v1100
    %v1801 = vunpack.c.l.b16 %v1101
    %v1802 = vunpack.c.h.b16 %v1101
    %v1803 = vunpack.c.l.b16 %v1102
    %v1804 = vunpack.c.h.b16 %v1102
    %v1805 = vunpack.c.l.b16 %v1103
    %v1806 = vunpack.c.h.b16 %v1103
    %v1807 = vunpack.c.l.b16 %v1104
    %v1808 = vunpack.c.h.b16 %v1104
    %v1809 = vunpack.c.l.b16 %v1105
    %v1810 = vunpack.c.h.b16 %v1105
    %v1811 = vunpack.c.l.b16 %v1106
    %v1812 = vunpack.c.h.b16 %v1106
    %v1813 = vunpack.c.l.b16 %v1107
    %v1814 = vunpack.c.h.b16 %v1107
    %v1815 = vunpack.c.l.b16 %v1108
    %v1816 = vunpack.c.h.b16 %v1108
    %v1817 = vunpack.c.l.b16 %v1109
    %v1818 = vunpack.c.h.b16 %v1109
    %v1819 = vunpack.c.l.b16 %v1110
    %v1820 = vunpack.c.h.b16 %v1110
    %v1821 = vunpack.c.l.b16 %v1111
    %v1822 = vunpack.c.h.b16 %v1111
    %v1823 = vunpack.c.l.b16 %v1112
    %v1824 = vunpack.c.h.b16 %v1112
    %v1825 = vunpack.c.l.b16 %v1113
    %v1826 = vunpack.c.h.b16 %v1113
    %v1827 = vunpack.c.l.b16 %v1114
    %v1828 = vunpack.c.h.b16 %v1114
    %v1829 = vunpack.c.l.b16 %v1115
    %v1830 = vunpack.c.h.b16 %v1115
    %v1831 = vunpack.c.l.b16 %v1116
    %v1832 = vunpack.c.h.b16 %v1116
    %v1833 = vunpack.c.l.b16 %v1117
    %v1834 = vunpack.c.h.b16 %v1117
    %v1835 = vunpack.c.l.b16 %v1118
    %v1836 = vunpack.c.h.b16 %v1118
    %v1837 = vunpack.c.l.b16 %v1119
    %v1838 = vunpack.c.h.b16 %v1119
    %v1839 = vunpack.c.l.b16 %v1120
    %v1840 = vunpack.c.h.b16 %v1120
    %v1841 = vunpack.c.l.b16 %v1121
    %v1842 = vunpack.c.h.b16 %v1121
    %v1843 = vunpack.c.l.b16 %v1122
    %v1844 = vunpack.c.h.b16 %v1122
    %v1845 = vunpack.c.l.b16 %v1123
    %v1846 = vunpack.c.h.b16 %v1123
    %v1847 = vunpack.c.l.b16 %v1124
    %v1848 = vunpack.c.h.b16 %v1124
    %v1849 = vunpack.c.l.b16 %v1125
    %v1850 = vunpack.c.h.b16 %v1125
    %v1851 = vunpack.c.l.b16 %v1126
    %v1852 = vunpack.c.h.b16 %v1126
    %v1853 = vunpack.c.l.b16 %v1127
    %v1854 = vunpack.c.h.b16 %v1127
    %v1855 = vunpack.c.l.b16 %v1128
    %v1856 = vunpack.c.h.b16 %v1128
    %v1857 = vunpack.c.l.b16 %v1129
    %v1858 = vunpack.c.h.b16 %v1129
    %v1859 = vunpack.c.l.b16 %v1130
    %v1860 = vunpack.c.h.b16 %v1130
    %v1861 = vunpack.c.l.b16 %v1131
    %v1862 = vunpack.c.h.b16 %v1131
    %v1863 = vunpack.c.l.b16 %v1132
    %v1864 = vunpack.c.h.b16 %v1132
    %v1865 = vunpack.c.l.b16 %v1133
    %v1866 = vunpack.c.h.b16 %v1133
    %v1867 = vunpack.c.l.b16 %v1134
    %v1868 = vunpack.c.h.b16 %v1134
    %v1869 = vunpack.c.l.b16 %v1135
    %v1870 = vunpack.c.h.b16 %v1135
    %v1871 = vunpack.c.l.b16 %v1136
    %v1872 = vunpack.c.h.b16 %v1136
    %v1873 = vunpack.c.l.b16 %v1137
    %v1874 = vunpack.c.h.b16 %v1137
    %v1875 = vunpack.c.l.b16 %v1138
    %v1876 = vunpack.c.h.b16 %v1138
    %v1877 = vunpack.c.l.b16 %v1139
    %v1878 = vunpack.c.h.b16 %v1139
    %v1879 = vunpack.c.l.b16 %v1140
    %v1880 = vunpack.c.h.b16 %v1140
    %v1881 = vunpack.c.l.b16 %v1141
    %v1882 = vunpack.c.h.b16 %v1141
    %v1883 = vunpack.c.l.b16 %v1142
    %v1884 = vunpack.c.h.b16 %v1142
    %v1885 = vunpack.c.l.b16 %v1143
    %v1886 = vunpack.c.h.b16 %v1143
    %v1887 = vunpack.c.l.b16 %v1144
    %v1888 = vunpack.c.h.b16 %v1144
    %v1889 = vunpack.c.l.b16 %v1145
    %v1890 = vunpack.c.h.b16 %v1145
    %v1891 = vunpack.c.l.b16 %v1146
    %v1892 = vunpack.c.h.b16 %v1146
    %v1893 = vunpack.c.l.b16 %v1147
    %v1894 = vunpack.c.h.b16 %v1147
    %v1895 = vunpack.c.l.b16 %v1148
    %v1896 = vunpack.c.h.b16 %v1148
    %v1897 = vunpack.c.l.b16 %v1149
    %v1898 = vunpack.c.h.b16 %v1149
    %v1899 = vunpack.c.l.b16 %v1150
    %v1900 = vunpack.c.h.b16 %v1150
    %v1901 = vunpack.c.l.b16 %v1151
    %v1902 = vunpack.c.h.b16 %v1151
    %v1903 = vunpack.c.l.b16 %v1152
    %v1904 = vunpack.c.h.b16 %v1152
    %v1905 = vunpack.c.l.b16 %v1153
    %v1906 = vunpack.c.h.b16 %v1153
    %v1907 = vunpack.c.l.b16 %v1154
    %v1908 = vunpack.c.h.b16 %v1154
    %v1909 = vunpack.c.l.b16 %v1155
    %v1910 = vunpack.c.h.b16 %v1155
    %v1911 = vunpack.c.l.b16 %v1156
    %v1912 = vunpack.c.h.b16 %v1156
    %v1913 = vunpack.c.l.b16 %v1157
    %v1914 = vunpack.c.h.b16 %v1157
    %v1915 = vunpack.c.l.b16 %v1158
    %v1916 = vunpack.c.h.b16 %v1158
    %v1917 = vunpack.c.l.b16 %v1159
    %v1918 = vunpack.c.h.b16 %v1159
    %v1919 = vunpack.c.l.b16 %v1160
    %v1920 = vunpack.c.h.b16 %v1160
    %v1921 = vunpack.c.l.b16 %v1161
    %v1922 = vunpack.c.h.b16 %v1161
    %v1923 = vunpack.c.l.b16 %v1162
    %v1924 = vunpack.c.h.b16 %v1162
    %v1925 = vunpack.c.l.b16 %v1163
    %v1926 = vunpack.c.h.b16 %v1163
    %v1927 = vunpack.c.l.b16 %v1164
    %v1928 = vunpack.c.h.b16 %v1164
    %v1929 = vunpack.c.l.b16 %v1165
    %v1930 = vunpack.c.h.b16 %v1165
    %v1931 = vunpack.c.l.b16 %v1166
    %v1932 = vunpack.c.h.b16 %v1166
    %v1933 = vunpack.c.l.b16 %v1167
    %v1934 = vunpack.c.h.b16 %v1167
    %v1935 = vunpack.c.l.b16 %v1168
    %v1936 = vunpack.c.h.b16 %v1168
    %v1937 = vunpack.c.l.b16 %v1169
    %v1938 = vunpack.c.h.b16 %v1169
    %v1939 = vunpack.c.l.b16 %v1170
    %v1940 = vunpack.c.h.b16 %v1170
    %v1941 = vunpack.c.l.b16 %v1171
    %v1942 = vunpack.c.h.b16 %v1171
    %v1943 = vunpack.c.l.b16 %v1172
    %v1944 = vunpack.c.h.b16 %v1172
    %v1945 = vunpack.c.l.b16 %v1173
    %v1946 = vunpack.c.h.b16 %v1173
    %v1947 = vunpack.c.l.b16 %v1174
    %v1948 = vunpack.c.h.b16 %v1174
    %v1949 = vunpack.c.l.b16 %v1175
    %v1950 = vunpack.c.h.b16 %v1175
    %v1951 = vunpack.c.l.b16 %v1176
    %v1952 = vunpack.c.h.b16 %v1176
    %v1953 = vunpack.c.l.b16 %v1177
    %v1954 = vunpack.c.h.b16 %v1177
    %v1955 = vunpack.c.l.b16 %v1178
    %v1956 = vunpack.c.h.b16 %v1178
    %v1957 = vunpack.c.l.b16 %v1179
    %v1958 = vunpack.c.h.b16 %v1179
    %v1959 = vunpack.c.l.b16 %v1180
    %v1960 = vunpack.c.h.b16 %v1180
    %v1961 = vpack.c.b16 %v1451, %v1449
    %v1962 = vpack.c.b16 %v1452, %v1450
    %v1963 = vpack.c.b16 %v1455, %v1453
    %v1964 = vpack.c.b16 %v1456, %v1454
    %v1965 = vpack.c.b16 %v1459, %v1457
    %v1966 = vpack.c.b16 %v1460, %v1458
    %v1967 = vpack.c.b16 %v1463, %v1461
    %v1968 = vpack.c.b16 %v1464, %v1462
    %v1969 = vpack.c.b16 %v1467, %v1465
    %v1970 = vpack.c.b16 %v1468, %v1466
    %v1971 = vpack.c.b16 %v1471, %v1469
    %v1972 = vpack.c.b16 %v1472, %v1470
    %v1973 = vpack.c.b16 %v1475, %v1473
    %v1974 = vpack.c.b16 %v1476, %v1474
    %v1975 = vpack.c.b16 %v1479, %v1477
    %v1976 = vpack.c.b16 %v1480, %v1478
    %v1977 = vpack.c.b16 %v1483, %v1481
    %v1978 = vpack.c.b16 %v1484, %v1482
    %v1979 = vpack.c.b16 %v1487, %v1485
    %v1980 = vpack.c.b16 %v1488, %v1486
    %v1981 = vpack.c.b16 %v1491, %v1489
    %v1982 = vpack.c.b16 %v1492, %v1490
    %v1983 = vpack.c.b16 %v1495, %v1493
    %v1984 = vpack.c.b16 %v1496, %v1494
    %v1985 = vpack.c.b16 %v1499, %v1497
    %v1986 = vpack.c.b16 %v1500, %v1498
    %v1987 = vpack.c.b16 %v1503, %v1501
    %v1988 = vpack.c.b16 %v1504, %v1502
    %v1989 = vpack.c.b16 %v1507, %v1505
    %v1990 = vpack.c.b16 %v1508, %v1506
    %v1991 = vpack.c.b16 %v1511, %v1509
    %v1992 = vpack.c.b16 %v1512, %v1510
    %v1993 = vpack.c.b16 %v1515, %v1513
    %v1994 = vpack.c.b16 %v1516, %v1514
    %v1995 = vpack.c.b16 %v1519, %v1517
    %v1996 = vpack.c.b16 %v1520, %v1518
    %v1997 = vpack.c.b16 %v1523, %v1521
    %v1998 = vpack.c.b16 %v1524, %v1522
    %v1999 = vpack.c.b16 %v1527, %v1525
    %v2000 = vpack.c.b16 %v1528, %v1526
    %v2001 = vpack.c.b16 %v1531, %v1529
    %v2002 = vpack.c.b16 %v1532, %v1530
    %v2003 = vpack.c.b16 %v1535, %v1533
    %v2004 = vpack.c.b16 %v1536, %v1534
    %v2005 = vpack.c.b16 %v1539, %v1537
    %v2006 = vpack.c.b16 %v1540, %v1538
    %v2007 = vpack.c.b16 %v1543, %v1541
    %v2008 = vpack.c.b16 %v1544, %v1542
    %v2009 = vpack.c.b16 %v1547, %v1545
    %v2010 = vpack.c.b16 %v1548, %v1546
    %v2011 = vpack.c.b16 %v1551, %v1549
    %v2012 = vpack.c.b16 %v1552, %v1550
    %v2013 = vpack.c.b16 %v1555, %v1553
    %v2014 = vpack.c.b16 %v1556, %v1554
    %v2015 = vpack.c.b16 %v1559, %v1557
    %v2016 = vpack.c.b16 %v1560, %v1558
    %v2017 = vpack.c.b16 %v1563, %v1561
    %v2018 = vpack.c.b16 %v1564, %v1562
    %v2019 = vpack.c.b16 %v1567, %v1565
    %v2020 = vpack.c.b16 %v1568, %v1566
    %v2021 = vpack.c.b16 %v1571, %v1569
    %v2022 = vpack.c.b16 %v1572, %v1570
    %v2023 = vpack.c.b16 %v1575, %v1573
    %v2024 = vpack.c.b16 %v1576, %v1574
    %v2025 = vpack.c.b16 %v1579, %v1577
    %v2026 = vpack.c.b16 %v1580, %v1578
    %v2027 = vpack.c.b16 %v1583, %v1581
    %v2028 = vpack.c.b16 %v1584, %v1582
    %v2029 = vpack.c.b16 %v1587, %v1585
    %v2030 = vpack.c.b16 %v1588, %v1586
    %v2031 = vpack.c.b16 %v1591, %v1589
    %v2032 = vpack.c.b16 %v1592, %v1590
    %v2033 = vpack.c.b16 %v1595, %v1593
    %v2034 = vpack.c.b16 %v1596, %v1594
    %v2035 = vpack.c.b16 %v1599, %v1597
    %v2036 = vpack.c.b16 %v1600, %v1598
    %v2037 = vpack.c.b16 %v1603, %v1601
    %v2038 = vpack.c.b16 %v1604, %v1602
    %v2039 = vpack.c.b16 %v1607, %v1605
    %v2040 = vpack.c.b16 %v1608, %v1606
    %v2041 = vpack.c.b16 %v1611, %v1609
    %v2042 = vpack.c.b16 %v1612, %v1610
    %v2043 = vpack.c.b16 %v1615, %v1613
    %v2044 = vpack.c.b16 %v1616, %v1614
    %v2045 = vpack.c.b16 %v1619, %v1617
    %v2046 = vpack.c.b16 %v1620, %v1618
    %v2047 = vpack.c.b16 %v1623, %v1621
    %v2048 = vpack.c.b16 %v1624, %v1622
    %v2049 = vpack.c.b16 %v1627, %v1625
    %v2050 = vpack.c.b16 %v1628, %v1626
    %v2051 = vpack.c.b16 %v1631, %v1629
    %v2052 = vpack.c.b16 %v1632, %v1630
    %v2053 = vpack.c.b16 %v1635, %v1633
    %v2054 = vpack.c.b16 %v1636, %v1634
    %v2055 = vpack.c.b16 %v1639, %v1637
    %v2056 = vpack.c.b16 %v1640, %v1638
    %v2057 = vpack.c.b16 %v1643, %v1641
    %v2058 = vpack.c.b16 %v1644, %v1642
    %v2059 = vpack.c.b16 %v1647, %v1645
    %v2060 = vpack.c.b16 %v1648, %v1646
    %v2061 = vpack.c.b16 %v1651, %v1649
    %v2062 = vpack.c.b16 %v1652, %v1650
    %v2063 = vpack.c.b16 %v1655, %v1653
    %v2064 = vpack.c.b16 %v1656, %v1654
    %v2065 = vpack.c.b16 %v1659, %v1657
    %v2066 = vpack.c.b16 %v1660, %v1658
    %v2067 = vpack.c.b16 %v1663, %v1661
    %v2068 = vpack.c.b16 %v1664, %v1662
    %v2069 = vpack.c.b16 %v1667, %v1665
    %v2070 = vpack.c.b16 %v1668, %v1666
    %v2071 = vpack.c.b16 %v1671, %v1669
    %v2072 = vpack.c.b16 %v1672, %v1670
    %v2073 = vpack.c.b16 %v1675, %v1673
    %v2074 = vpack.c.b16 %v1676, %v1674
    %v2075 = vpack.c.b16 %v1679, %v1677
    %v2076 = vpack.c.b16 %v1680, %v1678
    %v2077 = vpack.c.b16 %v1683, %v1681
    %v2078 = vpack.c.b16 %v1684, %v1682
    %v2079 = vpack.c.b16 %v1687, %v1685
    %v2080 = vpack.c.b16 %v1688, %v1686
    %v2081 = vpack.c.b16 %v1691, %v1689
    %v2082 = vpack.c.b16 %v1692, %v1690
    %v2083 = vpack.c.b16 %v1695, %v1693
    %v2084 = vpack.c.b16 %v1696, %v1694
    %v2085 = vpack.c.b16 %v1699, %v1697
    %v2086 = vpack.c.b16 %v1700, %v1698
    %v2087 = vpack.c.b16 %v1703, %v1701
    %v2088 = vpack.c.b16 %v1704, %v1702
    %v2089 = vpack.c.b16 %v1707, %v1705
    %v2090 = vpack.c.b16 %v1708, %v1706
    %v2091 = vpack.c.b16 %v1711, %v1709
    %v2092 = vpack.c.b16 %v1712, %v1710
    %v2093 = vpack.c.b16 %v1715, %v1713
    %v2094 = vpack.c.b16 %v1716, %v1714
    %v2095 = vpack.c.b16 %v1719, %v1717
    %v2096 = vpack.c.b16 %v1720, %v1718
    %v2097 = vpack.c.b16 %v1723, %v1721
    %v2098 = vpack.c.b16 %v1724, %v1722
    %v2099 = vpack.c.b16 %v1727, %v1725
    %v2100 = vpack.c.b16 %v1728, %v1726
    %v2101 = vpack.c.b16 %v1731, %v1729
    %v2102 = vpack.c.b16 %v1732, %v1730
    %v2103 = vpack.c.b16 %v1735, %v1733
    %v2104 = vpack.c.b16 %v1736, %v1734
    %v2105 = vpack.c.b16 %v1739, %v1737
    %v2106 = vpack.c.b16 %v1740, %v1738
    %v2107 = vpack.c.b16 %v1743, %v1741
    %v2108 = vpack.c.b16 %v1744, %v1742
    %v2109 = vpack.c.b16 %v1747, %v1745
    %v2110 = vpack.c.b16 %v1748, %v1746
    %v2111 = vpack.c.b16 %v1751, %v1749
    %v2112 = vpack.c.b16 %v1752, %v1750
    %v2113 = vpack.c.b16 %v1755, %v1753
    %v2114 = vpack.c.b16 %v1756, %v1754
    %v2115 = vpack.c.b16 %v1759, %v1757
    %v2116 = vpack.c.b16 %v1760, %v1758
    %v2117 = vpack.c.b16 %v1763, %v1761
    %v2118 = vpack.c.b16 %v1764, %v1762
    %v2119 = vpack.c.b16 %v1767, %v1765
    %v2120 = vpack.c.b16 %v1768, %v1766
    %v2121 = vpack.c.b16 %v1771, %v1769
    %v2122 = vpack.c.b16 %v1772, %v1770
    %v2123 = vpack.c.b16 %v1775, %v1773
    %v2124 = vpack.c.b16 %v1776, %v1774
    %v2125 = vpack.c.b16 %v1779, %v1777
    %v2126 = vpack.c.b16 %v1780, %v1778
    %v2127 = vpack.c.b16 %v1783, %v1781
    %v2128 = vpack.c.b16 %v1784, %v1782
    %v2129 = vpack.c.b16 %v1787, %v1785
    %v2130 = vpack.c.b16 %v1788, %v1786
    %v2131 = vpack.c.b16 %v1791, %v1789
    %v2132 = vpack.c.b16 %v1792, %v1790
    %v2133 = vpack.c.b16 %v1795, %v1793
    %v2134 = vpack.c.b16 %v1796, %v1794
    %v2135 = vpack.c.b16 %v1799, %v1797
    %v2136 = vpack.c.b16 %v1800, %v1798
    %v2137 = vpack.c.b16 %v1803, %v1801
    %v2138 = vpack.c.b16 %v1804, %v1802
    %v2139 = vpack.c.b16 %v1807, %v1805
    %v2140 = vpack.c.b16 %v1808, %v1806
    %v2141 = vpack.c.b16 %v1811, %v1809
    %v2142 = vpack.c.b16 %v1812, %v1810
    %v2143 = vpack.c.b16 %v1815, %v1813
    %v2144 = vpack.c.b16 %v1816, %v1814
    %v2145 = vpack.c.b16 %v1819, %v1817
    %v2146 = vpack.c.b16 %v1820, %v1818
    %v2147 = vpack.c.b16 %v1823, %v1821
    %v2148 = vpack.c.b16 %v1824, %v1822
    %v2149 = vpack.c.b16 %v1827, %v1825
    %v2150 = vpack.c.b16 %v1828, %v1826
    %v2151 = vpack.c.b16 %v1831, %v1829
    %v2152 = vpack.c.b16 %v1832, %v1830
    %v2153 = vpack.c.b16 %v1835, %v1833
    %v2154 = vpack.c.b16 %v1836, %v1834
    %v2155 = vpack.c.b16 %v1839, %v1837
    %v2156 = vpack.c.b16 %v1840, %v1838
    %v2157 = vpack.c.b16 %v1843, %v1841
    %v2158 = vpack.c.b16 %v1844, %v1842
    %v2159 = vpack.c.b16 %v1847, %v1845
    %v2160 = vpack.c.b16 %v1848, %v1846
    %v2161 = vpack.c.b16 %v1851, %v1849
    %v2162 = vpack.c.b16 %v1852, %v1850
    %v2163 = vpack.c.b16 %v1855, %v1853
    %v2164 = vpack.c.b16 %v1856, %v1854
    %v2165 = vpack.c.b16 %v1859, %v1857
    %v2166 = vpack.c.b16 %v1860, %v1858
    %v2167 = vpack.c.b16 %v1863, %v1861
    %v2168 = vpack.c.b16 %v1864, %v1862
    %v2169 = vpack.c.b16 %v1867, %v1865
    %v2170 = vpack.c.b16 %v1868, %v1866
    %v2171 = vpack.c.b16 %v1871, %v1869
    %v2172 = vpack.c.b16 %v1872, %v1870
    %v2173 = vpack.c.b16 %v1875, %v1873
    %v2174 = vpack.c.b16 %v1876, %v1874
    %v2175 = vpack.c.b16 %v1879, %v1877
    %v2176 = vpack.c.b16 %v1880, %v1878
    %v2177 = vpack.c.b16 %v1883, %v1881
    %v2178 = vpack.c.b16 %v1884, %v1882
    %v2179 = vpack.c.b16 %v1887, %v1885
    %v2180 = vpack.c.b16 %v1888, %v1886
    %v2181 = vpack.c.b16 %v1891, %v1889
    %v2182 = vpack.c.b16 %v1892, %v1890
    %v2183 = vpack.c.b16 %v1895, %v1893
    %v2184 = vpack.c.b16 %v1896, %v1894
    %v2185 = vpack.c.b16 %v1899, %v1897
    %v2186 = vpack.c.b16 %v1900, %v1898
    %v2187 = vpack.c.b16 %v1903, %v1901
    %v2188 = vpack.c.b16 %v1904, %v1902
    %v2189 = vpack.c.b16 %v1907, %v1905
    %v2190 = vpack.c.b16 %v1908, %v1906
    %v2191 = vpack.c.b16 %v1911, %v1909
    %v2192 = vpack.c.b16 %v1912, %v1910
    %v2193 = vpack.c.b16 %v1915, %v1913
    %v2194 = vpack.c.b16 %v1916, %v1914
    %v2195 = vpack.c.b16 %v1919, %v1917
    %v2196 = vpack.c.b16 %v1920, %v1918
    %v2197 = vpack.c.b16 %v1923, %v1921
    %v2198 = vpack.c.b16 %v1924, %v1922
    %v2199 = vpack.c.b16 %v1927, %v1925
    %v2200 = vpack.c.b16 %v1928, %v1926
    %v2201 = vpack.c.b16 %v1931, %v1929
    %v2202 = vpack.c.b16 %v1932, %v1930
    %v2203 = vpack.c.b16 %v1935, %v1933
    %v2204 = vpack.c.b16 %v1936, %v1934
    %v2205 = vpack.c.b16 %v1939, %v1937
    %v2206 = vpack.c.b16 %v1940, %v1938
    %v2207 = vpack.c.b16 %v1943, %v1941
    %v2208 = vpack.c.b16 %v1944, %v1942
    %v2209 = vpack.c.b16 %v1947, %v1945
    %v2210 = vpack.c.b16 %v1948, %v1946
    %v2211 = vpack.c.b16 %v1951, %v1949
    %v2212 = vpack.c.b16 %v1952, %v1950
    %v2213 = vpack.c.b16 %v1955, %v1953
    %v2214 = vpack.c.b16 %v1956, %v1954
    %v2215 = vpack.c.b16 %v1959, %v1957
    %v2216 = vpack.c.b16 %v1960, %v1958
    %2473 = vmatprep.subr.bf16.mxu0 %v1962
    %2474 = vmatpush1.bf16.msra.mxu0 %v1961
    %2475 = vmatprep.subr.bf16.mxu0 %v1964
    %2476 = vmatpush1.bf16.msra.mxu0 %v1963
    %2477 = vmatprep.subr.bf16.mxu0 %v1966
    %2478 = vmatpush1.bf16.msra.mxu0 %v1965
    %2479 = vmatprep.subr.bf16.mxu0 %v1968
    %2480 = vmatpush1.bf16.msra.mxu0 %v1967
    %2481 = vmatprep.subr.bf16.mxu0 %v1970
    %2482 = vmatpush1.bf16.msra.mxu0 %v1969
    %2483 = vmatprep.subr.bf16.mxu0 %v1972
    %2484 = vmatpush1.bf16.msra.mxu0 %v1971
    %2485 = vmatprep.subr.bf16.mxu0 %v1974
    %2486 = vmatpush1.bf16.msra.mxu0 %v1973
    %2487 = vmatprep.subr.bf16.mxu0 %v1976
    %2488 = vmatpush1.bf16.msra.mxu0 %v1975
    %2489 = vmatprep.subr.bf16.mxu0 %v1978
    %2490 = vmatpush1.bf16.msra.mxu0 %v1977
    %2491 = vmatprep.subr.bf16.mxu0 %v1980
    %2492 = vmatpush1.bf16.msra.mxu0 %v1979
    %2493 = vmatprep.subr.bf16.mxu0 %v1982
    %2494 = vmatpush1.bf16.msra.mxu0 %v1981
    %2495 = vmatprep.subr.bf16.mxu0 %v1984
    %2496 = vmatpush1.bf16.msra.mxu0 %v1983
    %2497 = vmatprep.subr.bf16.mxu0 %v1986
    %2498 = vmatpush1.bf16.msra.mxu0 %v1985
    %2499 = vmatprep.subr.bf16.mxu0 %v1988
    %2500 = vmatpush1.bf16.msra.mxu0 %v1987
    %2501 = vmatprep.subr.bf16.mxu0 %v1990
    %2502 = vmatpush1.bf16.msra.mxu0 %v1989
    %2503 = vmatprep.subr.bf16.mxu0 %v1992
    %2504 = vmatpush1.bf16.msra.mxu0 %v1991
    %2505 = vmatprep.mubr.bf16.mxu0 %v910
    %2506 = vmatmul.mubr.bf16.gmra.mrb[0].mxu0 %v909
    %v2507 = vpop.f32.mrb[0].mxu0
    %v2508 = vadd.f32 %v1186, %v2507
    %v2509 = vpop.f32.mrb[0].mxu0
    %v2510 = vadd.f32 %v1190, %v2509
    %v2511 = vpop.f32.mrb[0].mxu0
    %v2512 = vpop.f32.mrb[0].mxu0
    %2513 = vdwg.mxu0
    %2514 = vmatprep.subr.bf16.mxu0 %v1994
    %2515 = vmatpush1.bf16.msra.mxu0 %v1993
    %2516 = vmatprep.subr.bf16.mxu0 %v1996
    %2517 = vmatpush1.bf16.msra.mxu0 %v1995
    %2518 = vmatprep.subr.bf16.mxu0 %v1998
    %2519 = vmatpush1.bf16.msra.mxu0 %v1997
    %2520 = vmatprep.subr.bf16.mxu0 %v2000
    %2521 = vmatpush1.bf16.msra.mxu0 %v1999
    %2522 = vmatprep.subr.bf16.mxu0 %v2002
    %2523 = vmatpush1.bf16.msra.mxu0 %v2001
    %2524 = vmatprep.subr.bf16.mxu0 %v2004
    %2525 = vmatpush1.bf16.msra.mxu0 %v2003
    %2526 = vmatprep.subr.bf16.mxu0 %v2006
    %2527 = vmatpush1.bf16.msra.mxu0 %v2005
    %2528 = vmatprep.subr.bf16.mxu0 %v2008
    %2529 = vmatpush1.bf16.msra.mxu0 %v2007
    %2530 = vmatprep.subr.bf16.mxu0 %v2010
    %2531 = vmatpush1.bf16.msra.mxu0 %v2009
    %2532 = vmatprep.subr.bf16.mxu0 %v2012
    %2533 = vmatpush1.bf16.msra.mxu0 %v2011
    %2534 = vmatprep.subr.bf16.mxu0 %v2014
    %2535 = vmatpush1.bf16.msra.mxu0 %v2013
    %2536 = vmatprep.subr.bf16.mxu0 %v2016
    %2537 = vmatpush1.bf16.msra.mxu0 %v2015
    %2538 = vmatprep.subr.bf16.mxu0 %v2018
    %2539 = vmatpush1.bf16.msra.mxu0 %v2017
    %2540 = vmatprep.subr.bf16.mxu0 %v2020
    %2541 = vmatpush1.bf16.msra.mxu0 %v2019
    %2542 = vmatprep.subr.bf16.mxu0 %v2022
    %2543 = vmatpush1.bf16.msra.mxu0 %v2021
    %2544 = vmatprep.subr.bf16.mxu0 %v2024
    %2545 = vmatpush1.bf16.msra.mxu0 %v2023
    %2546 = vmatprep.mubr.bf16.mxu0 %v912
    %2547 = vmatmul.mubr.bf16.gmra.mrb[0].mxu0 %v911
    %v2548 = vpop.f32.mrb[0].mxu0
    %v2549 = vadd.f32 %v2508, %v2548
    %v2550 = vpop.f32.mrb[0].mxu0
    %v2551 = vadd.f32 %v2510, %v2550
    %v2552 = vpop.f32.mrb[0].mxu0
    %v2553 = vpop.f32.mrb[0].mxu0
    %2554 = vdwg.mxu0
    %2555 = vmatprep.subr.bf16.mxu0 %v2026
    %2556 = vmatpush1.bf16.msra.mxu0 %v2025
    %2557 = vmatprep.subr.bf16.mxu0 %v2028
    %2558 = vmatpush1.bf16.msra.mxu0 %v2027
    %2559 = vmatprep.subr.bf16.mxu0 %v2030
    %2560 = vmatpush1.bf16.msra.mxu0 %v2029
    %2561 = vmatprep.subr.bf16.mxu0 %v2032
    %2562 = vmatpush1.bf16.msra.mxu0 %v2031
    %2563 = vmatprep.subr.bf16.mxu0 %v2034
    %2564 = vmatpush1.bf16.msra.mxu0 %v2033
    %2565 = vmatprep.subr.bf16.mxu0 %v2036
    %2566 = vmatpush1.bf16.msra.mxu0 %v2035
    %2567 = vmatprep.subr.bf16.mxu0 %v2038
    %2568 = vmatpush1.bf16.msra.mxu0 %v2037
    %2569 = vmatprep.subr.bf16.mxu0 %v2040
    %2570 = vmatpush1.bf16.msra.mxu0 %v2039
    %2571 = vmatprep.subr.bf16.mxu0 %v2042
    %2572 = vmatpush1.bf16.msra.mxu0 %v2041
    %2573 = vmatprep.subr.bf16.mxu0 %v2044
    %2574 = vmatpush1.bf16.msra.mxu0 %v2043
    %2575 = vmatprep.subr.bf16.mxu0 %v2046
    %2576 = vmatpush1.bf16.msra.mxu0 %v2045
    %2577 = vmatprep.subr.bf16.mxu0 %v2048
    %2578 = vmatpush1.bf16.msra.mxu0 %v2047
    %2579 = vmatprep.subr.bf16.mxu0 %v2050
    %2580 = vmatpush1.bf16.msra.mxu0 %v2049
    %2581 = vmatprep.subr.bf16.mxu0 %v2052
    %2582 = vmatpush1.bf16.msra.mxu0 %v2051
    %2583 = vmatprep.subr.bf16.mxu0 %v2054
    %2584 = vmatpush1.bf16.msra.mxu0 %v2053
    %2585 = vmatprep.subr.bf16.mxu0 %v2056
    %2586 = vmatpush1.bf16.msra.mxu0 %v2055
    %2587 = vmatprep.mubr.bf16.mxu0 %v914
    %2588 = vmatmul.mubr.bf16.gmra.mrb[0].mxu0 %v913
    %v2589 = vpop.f32.mrb[0].mxu0
    %v2590 = vadd.f32 %v2549, %v2589
    %v2591 = vpop.f32.mrb[0].mxu0
    %v2592 = vadd.f32 %v2551, %v2591
    %v2593 = vpop.f32.mrb[0].mxu0
    %v2594 = vpop.f32.mrb[0].mxu0
    %2595 = vdwg.mxu0
    %2596 = vmatprep.subr.bf16.mxu0 %v2058
    %2597 = vmatpush1.bf16.msra.mxu0 %v2057
    %2598 = vmatprep.subr.bf16.mxu0 %v2060
    %2599 = vmatpush1.bf16.msra.mxu0 %v2059
    %2600 = vmatprep.subr.bf16.mxu0 %v2062
    %2601 = vmatpush1.bf16.msra.mxu0 %v2061
    %2602 = vmatprep.subr.bf16.mxu0 %v2064
    %2603 = vmatpush1.bf16.msra.mxu0 %v2063
    %2604 = vmatprep.subr.bf16.mxu0 %v2066
    %2605 = vmatpush1.bf16.msra.mxu0 %v2065
    %2606 = vmatprep.subr.bf16.mxu0 %v2068
    %2607 = vmatpush1.bf16.msra.mxu0 %v2067
    %2608 = vmatprep.subr.bf16.mxu0 %v2070
    %2609 = vmatpush1.bf16.msra.mxu0 %v2069
    %2610 = vmatprep.subr.bf16.mxu0 %v2072
    %2611 = vmatpush1.bf16.msra.mxu0 %v2071
    %2612 = vmatprep.subr.bf16.mxu0 %v2074
    %2613 = vmatpush1.bf16.msra.mxu0 %v2073
    %2614 = vmatprep.subr.bf16.mxu0 %v2076
    %2615 = vmatpush1.bf16.msra.mxu0 %v2075
    %2616 = vmatprep.subr.bf16.mxu0 %v2078
    %2617 = vmatpush1.bf16.msra.mxu0 %v2077
    %2618 = vmatprep.subr.bf16.mxu0 %v2080
    %2619 = vmatpush1.bf16.msra.mxu0 %v2079
    %2620 = vmatprep.subr.bf16.mxu0 %v2082
    %2621 = vmatpush1.bf16.msra.mxu0 %v2081
    %2622 = vmatprep.subr.bf16.mxu0 %v2084
    %2623 = vmatpush1.bf16.msra.mxu0 %v2083
    %2624 = vmatprep.subr.bf16.mxu0 %v2086
    %2625 = vmatpush1.bf16.msra.mxu0 %v2085
    %2626 = vmatprep.subr.bf16.mxu0 %v2088
    %2627 = vmatpush1.bf16.msra.mxu0 %v2087
    %2628 = vmatprep.mubr.bf16.mxu0 %v916
    %2629 = vmatmul.mubr.bf16.gmra.mrb[0].mxu0 %v915
    %v2630 = vpop.f32.mrb[0].mxu0
    %v2631 = vadd.f32 %v2590, %v2630
    %v2632 = vpop.f32.mrb[0].mxu0
    %v2633 = vadd.f32 %v2592, %v2632
    %v2634 = vpop.f32.mrb[0].mxu0
    %v2635 = vpop.f32.mrb[0].mxu0
    %2636 = vdwg.mxu0
    %2637 = vmatprep.subr.bf16.mxu0 %v2090
    %2638 = vmatpush1.bf16.msra.mxu0 %v2089
    %2639 = vmatprep.subr.bf16.mxu0 %v2092
    %2640 = vmatpush1.bf16.msra.mxu0 %v2091
    %2641 = vmatprep.subr.bf16.mxu0 %v2094
    %2642 = vmatpush1.bf16.msra.mxu0 %v2093
    %2643 = vmatprep.subr.bf16.mxu0 %v2096
    %2644 = vmatpush1.bf16.msra.mxu0 %v2095
    %2645 = vmatprep.subr.bf16.mxu0 %v2098
    %2646 = vmatpush1.bf16.msra.mxu0 %v2097
    %2647 = vmatprep.subr.bf16.mxu0 %v2100
    %2648 = vmatpush1.bf16.msra.mxu0 %v2099
    %2649 = vmatprep.subr.bf16.mxu0 %v2102
    %2650 = vmatpush1.bf16.msra.mxu0 %v2101
    %2651 = vmatprep.subr.bf16.mxu0 %v2104
    %2652 = vmatpush1.bf16.msra.mxu0 %v2103
    %2653 = vmatprep.subr.bf16.mxu0 %v2106
    %2654 = vmatpush1.bf16.msra.mxu0 %v2105
    %2655 = vmatprep.subr.bf16.mxu0 %v2108
    %2656 = vmatpush1.bf16.msra.mxu0 %v2107
    %2657 = vmatprep.subr.bf16.mxu0 %v2110
    %2658 = vmatpush1.bf16.msra.mxu0 %v2109
    %2659 = vmatprep.subr.bf16.mxu0 %v2112
    %2660 = vmatpush1.bf16.msra.mxu0 %v2111
    %2661 = vmatprep.subr.bf16.mxu0 %v2114
    %2662 = vmatpush1.bf16.msra.mxu0 %v2113
    %2663 = vmatprep.subr.bf16.mxu0 %v2116
    %2664 = vmatpush1.bf16.msra.mxu0 %v2115
    %2665 = vmatprep.subr.bf16.mxu0 %v2118
    %2666 = vmatpush1.bf16.msra.mxu0 %v2117
    %2667 = vmatprep.subr.bf16.mxu0 %v2120
    %2668 = vmatpush1.bf16.msra.mxu0 %v2119
    %2669 = vmatprep.mubr.bf16.mxu0 %v918
    %2670 = vmatmul.mubr.bf16.gmra.mrb[0].mxu0 %v917
    %v2671 = vpop.f32.mrb[0].mxu0
    %v2672 = vadd.f32 %v2631, %v2671
    %v2673 = vpop.f32.mrb[0].mxu0
    %v2674 = vadd.f32 %v2633, %v2673
    %v2675 = vpop.f32.mrb[0].mxu0
    %v2676 = vpop.f32.mrb[0].mxu0
    %2677 = vdwg.mxu0
    %2678 = vmatprep.subr.bf16.mxu0 %v2122
    %2679 = vmatpush1.bf16.msra.mxu0 %v2121
    %2680 = vmatprep.subr.bf16.mxu0 %v2124
    %2681 = vmatpush1.bf16.msra.mxu0 %v2123
    %2682 = vmatprep.subr.bf16.mxu0 %v2126
    %2683 = vmatpush1.bf16.msra.mxu0 %v2125
    %2684 = vmatprep.subr.bf16.mxu0 %v2128
    %2685 = vmatpush1.bf16.msra.mxu0 %v2127
    %2686 = vmatprep.subr.bf16.mxu0 %v2130
    %2687 = vmatpush1.bf16.msra.mxu0 %v2129
    %2688 = vmatprep.subr.bf16.mxu0 %v2132
    %2689 = vmatpush1.bf16.msra.mxu0 %v2131
    %2690 = vmatprep.subr.bf16.mxu0 %v2134
    %2691 = vmatpush1.bf16.msra.mxu0 %v2133
    %2692 = vmatprep.subr.bf16.mxu0 %v2136
    %2693 = vmatpush1.bf16.msra.mxu0 %v2135
    %2694 = vmatprep.subr.bf16.mxu0 %v2138
    %2695 = vmatpush1.bf16.msra.mxu0 %v2137
    %2696 = vmatprep.subr.bf16.mxu0 %v2140
    %2697 = vmatpush1.bf16.msra.mxu0 %v2139
    %2698 = vmatprep.subr.bf16.mxu0 %v2142
    %2699 = vmatpush1.bf16.msra.mxu0 %v2141
    %2700 = vmatprep.subr.bf16.mxu0 %v2144
    %2701 = vmatpush1.bf16.msra.mxu0 %v2143
    %2702 = vmatprep.subr.bf16.mxu0 %v2146
    %2703 = vmatpush1.bf16.msra.mxu0 %v2145
    %2704 = vmatprep.subr.bf16.mxu0 %v2148
    %2705 = vmatpush1.bf16.msra.mxu0 %v2147
    %2706 = vmatprep.subr.bf16.mxu0 %v2150
    %2707 = vmatpush1.bf16.msra.mxu0 %v2149
    %2708 = vmatprep.subr.bf16.mxu0 %v2152
    %2709 = vmatpush1.bf16.msra.mxu0 %v2151
    %2710 = vmatprep.mubr.bf16.mxu0 %v920
    %2711 = vmatmul.mubr.bf16.gmra.mrb[0].mxu0 %v919
    %v2712 = vpop.f32.mrb[0].mxu0
    %v2713 = vadd.f32 %v2672, %v2712
    %v2714 = vpop.f32.mrb[0].mxu0
    %v2715 = vadd.f32 %v2674, %v2714
    %v2716 = vpop.f32.mrb[0].mxu0
    %v2717 = vpop.f32.mrb[0].mxu0
    %2718 = vdwg.mxu0
    %2719 = vmatprep.subr.bf16.mxu0 %v2154
    %2720 = vmatpush1.bf16.msra.mxu0 %v2153
    %2721 = vmatprep.subr.bf16.mxu0 %v2156
    %2722 = vmatpush1.bf16.msra.mxu0 %v2155
    %2723 = vmatprep.subr.bf16.mxu0 %v2158
    %2724 = vmatpush1.bf16.msra.mxu0 %v2157
    %2725 = vmatprep.subr.bf16.mxu0 %v2160
    %2726 = vmatpush1.bf16.msra.mxu0 %v2159
    %2727 = vmatprep.subr.bf16.mxu0 %v2162
    %2728 = vmatpush1.bf16.msra.mxu0 %v2161
    %2729 = vmatprep.subr.bf16.mxu0 %v2164
    %2730 = vmatpush1.bf16.msra.mxu0 %v2163
    %2731 = vmatprep.subr.bf16.mxu0 %v2166
    %2732 = vmatpush1.bf16.msra.mxu0 %v2165
    %2733 = vmatprep.subr.bf16.mxu0 %v2168
    %2734 = vmatpush1.bf16.msra.mxu0 %v2167
    %2735 = vmatprep.subr.bf16.mxu0 %v2170
    %2736 = vmatpush1.bf16.msra.mxu0 %v2169
    %2737 = vmatprep.subr.bf16.mxu0 %v2172
    %2738 = vmatpush1.bf16.msra.mxu0 %v2171
    %2739 = vmatprep.subr.bf16.mxu0 %v2174
    %2740 = vmatpush1.bf16.msra.mxu0 %v2173
    %2741 = vmatprep.subr.bf16.mxu0 %v2176
    %2742 = vmatpush1.bf16.msra.mxu0 %v2175
    %2743 = vmatprep.subr.bf16.mxu0 %v2178
    %2744 = vmatpush1.bf16.msra.mxu0 %v2177
    %2745 = vmatprep.subr.bf16.mxu0 %v2180
    %2746 = vmatpush1.bf16.msra.mxu0 %v2179
    %2747 = vmatprep.subr.bf16.mxu0 %v2182
    %2748 = vmatpush1.bf16.msra.mxu0 %v2181
    %2749 = vmatprep.subr.bf16.mxu0 %v2184
    %2750 = vmatpush1.bf16.msra.mxu0 %v2183
    %2751 = vmatprep.mubr.bf16.mxu0 %v922
    %2752 = vmatmul.mubr.bf16.gmra.mrb[0].mxu0 %v921
    %v2753 = vpop.f32.mrb[0].mxu0
    %v2754 = vadd.f32 %v2713, %v2753
    %v2755 = vpop.f32.mrb[0].mxu0
    %v2756 = vadd.f32 %v2715, %v2755
    %v2757 = vpop.f32.mrb[0].mxu0
    %v2758 = vpop.f32.mrb[0].mxu0
    %2759 = vdwg.mxu0
    %2760 = vmatprep.subr.bf16.mxu0 %v2186
    %2761 = vmatpush1.bf16.msra.mxu0 %v2185
    %2762 = vmatprep.subr.bf16.mxu0 %v2188
    %2763 = vmatpush1.bf16.msra.mxu0 %v2187
    %2764 = vmatprep.subr.bf16.mxu0 %v2190
    %2765 = vmatpush1.bf16.msra.mxu0 %v2189
    %2766 = vmatprep.subr.bf16.mxu0 %v2192
    %2767 = vmatpush1.bf16.msra.mxu0 %v2191
    %2768 = vmatprep.subr.bf16.mxu0 %v2194
    %2769 = vmatpush1.bf16.msra.mxu0 %v2193
    %2770 = vmatprep.subr.bf16.mxu0 %v2196
    %2771 = vmatpush1.bf16.msra.mxu0 %v2195
    %2772 = vmatprep.subr.bf16.mxu0 %v2198
    %2773 = vmatpush1.bf16.msra.mxu0 %v2197
    %2774 = vmatprep.subr.bf16.mxu0 %v2200
    %2775 = vmatpush1.bf16.msra.mxu0 %v2199
    %2776 = vmatprep.subr.bf16.mxu0 %v2202
    %2777 = vmatpush1.bf16.msra.mxu0 %v2201
    %2778 = vmatprep.subr.bf16.mxu0 %v2204
    %2779 = vmatpush1.bf16.msra.mxu0 %v2203
    %2780 = vmatprep.subr.bf16.mxu0 %v2206
    %2781 = vmatpush1.bf16.msra.mxu0 %v2205
    %2782 = vmatprep.subr.bf16.mxu0 %v2208
    %2783 = vmatpush1.bf16.msra.mxu0 %v2207
    %2784 = vmatprep.subr.bf16.mxu0 %v2210
    %2785 = vmatpush1.bf16.msra.mxu0 %v2209
    %2786 = vmatprep.subr.bf16.mxu0 %v2212
    %2787 = vmatpush1.bf16.msra.mxu0 %v2211
    %2788 = vmatprep.subr.bf16.mxu0 %v2214
    %2789 = vmatpush1.bf16.msra.mxu0 %v2213
    %2790 = vmatprep.subr.bf16.mxu0 %v2216
    %2791 = vmatpush1.bf16.msra.mxu0 %v2215
    %2792 = vmatprep.mubr.bf16.mxu0 %v924
    %2793 = vmatmul.mubr.bf16.gmra.mrb[0].mxu0 %v923
    %v2794 = vpop.f32.mrb[0].mxu0
    %v2795 = vadd.f32 %v2754, %v2794
    %v2796 = vpop.f32.mrb[0].mxu0
    %v2797 = vadd.f32 %v2756, %v2796
    %v2798 = vpop.f32.mrb[0].mxu0
    %v2799 = vpop.f32.mrb[0].mxu0
    %2800 = vdwg.mxu0
    %v2801 = vmax.f32 %v2795, 0.0
    %v2802 = vmax.f32 %v2797, 0.0
    %v2803 = vpack.c.bf16 %v2801, %v2801
    %v2804 = vpack.c.bf16 %v2802, %v2802
    %v2805 = vld [vmem:[#allocation7] sm:$0xf]
    %v2806 = vld [vmem:[#allocation7 + $0x4] sm:$0xf]
    %v2807 = vld [vmem:[#allocation7 + $0x8] sm:$0xf]
    %v2808 = vld [vmem:[#allocation7 + $0xc] sm:$0xf]
    %v2809 = vld [vmem:[#allocation7 + $0x10] sm:$0xf]
    %v2810 = vld [vmem:[#allocation7 + $0x14] sm:$0xf]
    %v2811 = vld [vmem:[#allocation7 + $0x18] sm:$0xf]
    %v2812 = vld [vmem:[#allocation7 + $0x1c] sm:$0xf]
    %v2813 = vld [vmem:[#allocation7 + $0x20] sm:$0xf]
    %v2814 = vld [vmem:[#allocation7 + $0x24] sm:$0xf]
    %v2815 = vld [vmem:[#allocation7 + $0x28] sm:$0xf]
    %v2816 = vld [vmem:[#allocation7 + $0x2c] sm:$0xf]
    %v2817 = vld [vmem:[#allocation7 + $0x30] sm:$0xf]
    %v2818 = vld [vmem:[#allocation7 + $0x34] sm:$0xf]
    %v2819 = vld [vmem:[#allocation7 + $0x38] sm:$0xf]
    %v2820 = vld [vmem:[#allocation7 + $0x3c] sm:$0xf]
    %v2821 = vld [vmem:[#allocation7 + $0x40] sm:$0xf]
    %v2822 = vld [vmem:[#allocation7 + $0x44] sm:$0xf]
    %v2823 = vld [vmem:[#allocation7 + $0x48] sm:$0xf]
    %v2824 = vld [vmem:[#allocation7 + $0x4c] sm:$0xf]
    %v2825 = vld [vmem:[#allocation7 + $0x50] sm:$0xf]
    %v2826 = vld [vmem:[#allocation7 + $0x54] sm:$0xf]
    %v2827 = vld [vmem:[#allocation7 + $0x58] sm:$0xf]
    %v2828 = vld [vmem:[#allocation7 + $0x5c] sm:$0xf]
    %v2829 = vld [vmem:[#allocation7 + $0x60] sm:$0xf]
    %v2830 = vld [vmem:[#allocation7 + $0x64] sm:$0xf]
    %v2831 = vld [vmem:[#allocation7 + $0x68] sm:$0xf]
    %v2832 = vld [vmem:[#allocation7 + $0x6c] sm:$0xf]
    %v2833 = vld [vmem:[#allocation7 + $0x70] sm:$0xf]
    %v2834 = vld [vmem:[#allocation7 + $0x74] sm:$0xf]
    %v2835 = vld [vmem:[#allocation7 + $0x78] sm:$0xf]
    %v2836 = vld [vmem:[#allocation7 + $0x7c] sm:$0xf]
    %v2837 = vld [vmem:[%s6] sm:$0x1]
    %v2839 = vlaneseq
    %v2840 = vshrl.u32 %v2839, 7
    %v2841 = vsub.s32 0, %v2840
    %v2842 = vrot.slane %v2837, %v2841
    %v2876 = vunpack.c.l.b16 %v2805
    %v2877 = vunpack.c.l.b16 %v2806
    %v2878 = vunpack.c.l.b16 %v2807
    %v2879 = vunpack.c.l.b16 %v2808
    %v2880 = vunpack.c.l.b16 %v2809
    %v2881 = vunpack.c.l.b16 %v2810
    %v2882 = vunpack.c.l.b16 %v2811
    %v2883 = vunpack.c.l.b16 %v2812
    %v2884 = vunpack.c.l.b16 %v2813
    %v2885 = vunpack.c.l.b16 %v2814
    %v2886 = vunpack.c.l.b16 %v2815
    %v2887 = vunpack.c.l.b16 %v2816
    %v2888 = vunpack.c.l.b16 %v2817
    %v2889 = vunpack.c.l.b16 %v2818
    %v2890 = vunpack.c.l.b16 %v2819
    %v2891 = vunpack.c.l.b16 %v2820
    %v2892 = vunpack.c.l.b16 %v2821
    %v2893 = vunpack.c.l.b16 %v2822
    %v2894 = vunpack.c.l.b16 %v2823
    %v2895 = vunpack.c.l.b16 %v2824
    %v2896 = vunpack.c.l.b16 %v2825
    %v2897 = vunpack.c.l.b16 %v2826
    %v2898 = vunpack.c.l.b16 %v2827
    %v2899 = vunpack.c.l.b16 %v2828
    %v2900 = vunpack.c.l.b16 %v2829
    %v2901 = vunpack.c.l.b16 %v2830
    %v2902 = vunpack.c.l.b16 %v2831
    %v2903 = vunpack.c.l.b16 %v2832
    %v2904 = vunpack.c.l.b16 %v2833
    %v2905 = vunpack.c.l.b16 %v2834
    %v2906 = vunpack.c.l.b16 %v2835
    %v2907 = vunpack.c.l.b16 %v2836
    %v2908 = vpack.c.b16 %v2877, %v2876
    %v2909 = vpack.c.b16 %v2879, %v2878
    %v2910 = vpack.c.b16 %v2881, %v2880
    %v2911 = vpack.c.b16 %v2883, %v2882
    %v2912 = vpack.c.b16 %v2885, %v2884
    %v2913 = vpack.c.b16 %v2887, %v2886
    %v2914 = vpack.c.b16 %v2889, %v2888
    %v2915 = vpack.c.b16 %v2891, %v2890
    %v2916 = vpack.c.b16 %v2893, %v2892
    %v2917 = vpack.c.b16 %v2895, %v2894
    %v2918 = vpack.c.b16 %v2897, %v2896
    %v2919 = vpack.c.b16 %v2899, %v2898
    %v2920 = vpack.c.b16 %v2901, %v2900
    %v2921 = vpack.c.b16 %v2903, %v2902
    %v2922 = vpack.c.b16 %v2905, %v2904
    %v2923 = vpack.c.b16 %v2907, %v2906
    %2940 = vmatprep.subr.bf16.mxu0 0
    %2941 = vmatpush1.bf16.msra.mxu0 %v2908
    %2942 = vmatprep.subr.bf16.mxu0 0
    %2943 = vmatpush1.bf16.msra.mxu0 %v2909
    %2944 = vmatprep.subr.bf16.mxu0 0
    %2945 = vmatpush1.bf16.msra.mxu0 %v2910
    %2946 = vmatprep.subr.bf16.mxu0 0
    %2947 = vmatpush1.bf16.msra.mxu0 %v2911
    %2948 = vmatprep.subr.bf16.mxu0 0
    %2949 = vmatpush1.bf16.msra.mxu0 %v2912
    %2950 = vmatprep.subr.bf16.mxu0 0
    %2951 = vmatpush1.bf16.msra.mxu0 %v2913
    %2952 = vmatprep.subr.bf16.mxu0 0
    %2953 = vmatpush1.bf16.msra.mxu0 %v2914
    %2954 = vmatprep.subr.bf16.mxu0 0
    %2955 = vmatpush1.bf16.msra.mxu0 %v2915
    %2956 = vmatprep.subr.bf16.mxu0 0
    %2957 = vmatpush1.bf16.msra.mxu0 %v2916
    %2958 = vmatprep.subr.bf16.mxu0 0
    %2959 = vmatpush1.bf16.msra.mxu0 %v2917
    %2960 = vmatprep.subr.bf16.mxu0 0
    %2961 = vmatpush1.bf16.msra.mxu0 %v2918
    %2962 = vmatprep.subr.bf16.mxu0 0
    %2963 = vmatpush1.bf16.msra.mxu0 %v2919
    %2964 = vmatprep.subr.bf16.mxu0 0
    %2965 = vmatpush1.bf16.msra.mxu0 %v2920
    %2966 = vmatprep.subr.bf16.mxu0 0
    %2967 = vmatpush1.bf16.msra.mxu0 %v2921
    %2968 = vmatprep.subr.bf16.mxu0 0
    %2969 = vmatpush1.bf16.msra.mxu0 %v2922
    %2970 = vmatprep.subr.bf16.mxu0 0
    %2971 = vmatpush1.bf16.msra.mxu0 %v2923
    %2972 = vmatprep.mubr.bf16.mxu0 %v2804
    %2973 = vmatmul.mubr.bf16.gmra.mrb[0].mxu0 %v2803
    %v2974 = vpop.f32.mrb[0].mxu0
    %v2975 = vadd.f32 %v2842, %v2974
    %v2976 = vpop.f32.mrb[0].mxu0
    %v2977 = vpop.f32.mrb[0].mxu0
    %v2978 = vpop.f32.mrb[0].mxu0
    %2979 = vdwg.mxu0
    %2980 = vmax.xlane.f32.xlu0 %v2975
    %v2981 = vpop.xlane.xlu0 %2980
    %v2982 = vsub.f32 %v2975, %v2981
    %v2983 = vmul.f32 %v2982, 1.442695
    %v2984 = vpow.pop %v2983
    %2985 = vadd.xlane.f32.xlu0 %v2984
    %v2986 = vpop.xlane.xlu0 %2985
    %v2987 = vlog2.pop %v2986
    %v2988 = vmul.f32 %v2987, 0.6931472
    %v2989 = vsub.f32 %v2982, %v2988
    %2990 = vst [vmem:[#allocation8] sm:$0xff] %v2989
    // Predicated region
    $region42: #{tpu_custom_call.1} parent=1 // pred_check
      _
    $region43: #{tpu_custom_call.1} parent=1 // pred_check_branch
      %2992 = sbr.rel (0) target = $region45
    $region44: #{tpu_custom_call.1} parent=1 // pred_region
      %s2994 = ssub.s32 128, 128
      %2995 = vsyncadd [#allocation4], %s2994
      %s2997 = sshll.u32 [#allocation8], 4
      %s2998 = int_to_ptr.vmem [resolvable:$true] %s2997
      %3000 = dma.vmem_to_hbm [thread:$0]  %s2998, 128, %s7, [#allocation4]
    $region45: #{tpu_custom_call.1} parent=1 // pred_fallthru
      _
    // Predicated region
    $region46: #{tpu_custom_call.1} parent=1 // pred_check
      _
    $region47: #{tpu_custom_call.1} parent=1 // pred_check_branch
      %3002 = sbr.rel (0) target = $region49
    $region48: #{tpu_custom_call.1} parent=1 // pred_region
      %3003 = dma.done [#allocation4], 128
    $region49: #{tpu_custom_call.1} parent=1 // pred_fallthru
      _
    %3004 = vsyncpa [#allocation3], 1
    %3005 = vsyncpa [#allocation6], 1
    %3006 = vsyncpa [#allocation4], 1

</llo_original>
